<compile_context>
chip_gen: v7x
topology: tpu7x:2x2x1
jax: 0.10.0
libtpu: 0.0.40
codegen_flags: <defaults>
</compile_context>

<pallas_src>
import functools

import jax
import jax.numpy as jnp
from jax.experimental import pallas as pl
from jax.experimental.pallas import tpu as pltpu

LANES = 128
CHUNK_ROWS = 512                        # in-kernel compute chunk (multiple of 8/16/32)
TARGET_BLOCK_BYTES = 4 * 1024 * 1024    # ~4 MiB per input DMA block (perf review)
VMEM_LIMIT_BYTES = 32 * 1024 * 1024     # <= scoped/physical VMEM on v5e/v6e/v7x
MAX_PARTIALS = 8


def _gl_kernel(p_ref, y_ref, o_ref, *, steps_per_core, tile_rows, chunk_rows,
               rows_limit, neg_inv_sigma_sq):
    c = pl.program_id(0)          # partial / core index ("parallel")
    s = pl.program_id(1)          # reduction step within this partial ("arbitrary")

    @pl.when(s == 0)
    def _():
        o_ref[...] = jnp.zeros_like(o_ref)

    # UNCLAMPED block index: duplicate blocks (from the clamped index_map) and
    # Pallas block padding are fully masked on the boundary path below.
    b = c * steps_per_core + s
    row_start = b * tile_rows
    n_chunks = tile_rows // chunk_rows
    sub_chunks = chunk_rows // 8

    def process_chunk(ci, masked):
        r0 = pl.multiple_of(ci * chunk_rows, chunk_rows)
        pc = p_ref[pl.ds(r0, chunk_rows), :].astype(jnp.float32)
        yc = y_ref[pl.ds(r0, chunk_rows), :].astype(jnp.float32)
        d = yc - pc
        if masked:
            row_idx = row_start + r0 + jax.lax.broadcasted_iota(
                jnp.int32, (chunk_rows, 1), 0)
            d = jnp.where(row_idx < rows_limit, d, 0.0)   # mask BEFORE exp: gl(0)==0
        gl = 1.0 - jnp.exp((d * d) * neg_inv_sigma_sq)
        # Fold the chunk into the (8, 128) output accumulator with plain VPU
        # adds; the single cross-lane reduce happens once, in the wrapper.
        # NOTE: f32 running sums are fine up to ~1.7e10 elements per slot.
        o_ref[0] += jnp.sum(gl.reshape(sub_chunks, 8, LANES), axis=0)

    is_full = row_start + tile_rows <= rows_limit

    @pl.when(is_full)
    def _():                      # interior block: no mask work at all
        @pl.loop(0, n_chunks)
        def _(ci):
            process_chunk(ci, masked=False)

    @pl.when(jnp.logical_not(is_full))
    def _():                      # boundary / duplicate block: row-masked
        @pl.loop(0, n_chunks)
        def _(ci):
            process_chunk(ci, masked=True)


def _round_up(x: int, m: int) -> int:
    return ((x + m - 1) // m) * m


def _num_tensorcores() -> int:
    """Best-effort TensorCore count (2 on v7x megacore, 1 on v5e/v6e)."""
    try:
        info = pltpu.get_tpu_info()
        for attr in ("num_cores", "core_count", "num_tensorcores",
                     "tensorcore_count"):
            v = getattr(info, attr, None)
            if v:
                return int(v)
    except Exception:
        pass
    # Unknown -> 2-way split: ~2x on v7x, near-free on single-TC chips.
    return 2


def _gl_elems_f32(p, y, neg_inv_sigma_sq):
    d = y.astype(jnp.float32) - p.astype(jnp.float32)
    return 1.0 - jnp.exp((d * d) * neg_inv_sigma_sq)


def gl_loss(p: jax.Array, y: jax.Array,
            lam: float = 1.0, eps: float = 600.0, sigma: float = 8.0) -> jax.Array:
    """eps / lam**2 * mean(1 - exp(-(y - p)**2 / sigma**2)) — matches GL.forward."""
    assert p.shape == y.shape, "GL expects matching shapes"
    n = p.size
    neg_inv_sigma_sq = -1.0 / float(sigma * sigma)
    scale = float(eps) / float(lam) ** 2

    pf = p.reshape(-1)
    yf = y.reshape(-1)

    rem = n % LANES
    main = n - rem

    tail_sum = jnp.float32(0.0)
    if rem:
        # Sub-128-element tail handled with plain jnp (tiny) instead of
        # jnp.pad-ing / copying the whole arrays.
        tail_sum = jnp.sum(_gl_elems_f32(pf[main:], yf[main:], neg_inv_sigma_sq))
        if main == 0:   # whole input is smaller than one lane row
            return scale * tail_sum / jnp.float32(n)
        pf = pf[:main]  # only the rare lane-misaligned case pays a copy
        yf = yf[:main]

    rows = main // LANES
    pf = pf.reshape(rows, LANES)   # lane-dense slab in native dtype (no upcast)
    yf = yf.reshape(rows, LANES)

    max_item = max(jnp.dtype(p.dtype).itemsize, jnp.dtype(y.dtype).itemsize)
    target_rows = max(
        CHUNK_ROWS,
        (TARGET_BLOCK_BYTES // (LANES * max_item)) // CHUNK_ROWS * CHUNK_ROWS)
    tile_rows = min(target_rows, _round_up(rows, CHUNK_ROWS))

    total_blocks = pl.cdiv(rows, tile_rows)
    num_partials = max(1, min(_num_tensorcores(), total_blocks, MAX_PARTIALS))
    steps = pl.cdiv(total_blocks, num_partials)

    def in_map(c, s):
        # Clamp so the DMA never walks past the array; the kernel's row mask
        # zeroes any duplicated / padded rows.
        return (jnp.minimum(c * steps + s, total_blocks - 1), 0)

    kernel = functools.partial(
        _gl_kernel,
        steps_per_core=steps,
        tile_rows=tile_rows,
        chunk_rows=CHUNK_ROWS,
        rows_limit=rows,
        neg_inv_sigma_sq=neg_inv_sigma_sq,
    )

    out_bytes = num_partials * 8 * LANES * 4
    cost = pl.CostEstimate(
        flops=5 * main,
        transcendentals=main,
        bytes_accessed=main * (jnp.dtype(p.dtype).itemsize
                               + jnp.dtype(y.dtype).itemsize) + out_bytes,
    )

    partials = pl.pallas_call(
        kernel,
        out_shape=jax.ShapeDtypeStruct((num_partials, 8, LANES), jnp.float32),
        grid=(num_partials, steps),
        in_specs=[
            pl.BlockSpec((tile_rows, LANES), in_map),
            pl.BlockSpec((tile_rows, LANES), in_map),
        ],
        out_specs=pl.BlockSpec((1, 8, LANES), lambda c, s: (c, 0, 0)),
        compiler_params=pltpu.CompilerParams(
            dimension_semantics=("parallel", "arbitrary"),
            vmem_limit_bytes=VMEM_LIMIT_BYTES,
        ),
        cost_estimate=cost,
    )(pf, yf)

    total = jnp.sum(partials) + tail_sum
    return scale * total / jnp.float32(n)


def _ref_gl(p, y, lam=1.0, eps=600.0, sigma=8.0):
    return eps / lam ** 2 * jnp.mean(1.0 - jnp.exp(-((y - p) ** 2) / sigma ** 2))


if __name__ == "__main__":
    key = jax.random.PRNGKey(0)

    cases = [
        ((2, 4, 16, 16), jnp.float32),   # typical prediction/target shape
        ((3, 5, 7), jnp.float32),        # < 128 elems: pure-jnp tail path
        ((17, 33), jnp.float32),         # 561 elems: kernel main + jnp tail
        ((2112, 130), jnp.float32),      # lane-aligned, single masked block
        ((4096, 384), jnp.float32),      # multi-block, partial split, boundary mask
        ((256, 512), jnp.bfloat16),      # native-dtype bf16 streaming, full fast path
    ]
    for shape, dtype in cases:
        key, kp, ky = jax.random.split(key, 3)
        pa = jax.random.normal(kp, shape, dtype=jnp.float32).astype(dtype)
        ya = jax.random.normal(ky, shape, dtype=jnp.float32).astype(dtype)
        out = gl_loss(pa, ya)
        jax.block_until_ready(out)
        ref = _ref_gl(pa.astype(jnp.float32), ya.astype(jnp.float32))
        assert jnp.allclose(out, ref, rtol=1e-4, atol=1e-5), (shape, dtype, out, ref)

    print("KERNEL_OK")
</pallas_src>

<mosaic_0001>
module attributes {stable_mosaic.version = 11 : i64} {
  func.func @_gl_kernel(%arg0: i32, %arg1: i32, %arg2: memref<512x128xf32, #tpu.memory_space<vmem>>, %arg3: memref<512x128xf32, #tpu.memory_space<vmem>>, %arg4: memref<1x8x128xf32, #tpu.memory_space<vmem>>) attributes {dimension_semantics = [#tpu.dimension_semantics<parallel>, #tpu.dimension_semantics<arbitrary>], iteration_bounds = array<i64: 1, 1>, scalar_prefetch = 0 : i64, scratch_operands = 0 : i64, tpu.core_type = #tpu.core_type<tc>, window_params = [{transform_indices = @transform_0, window_bounds = array<i64: 512, 128>}, {transform_indices = @transform_1, window_bounds = array<i64: 512, 128>}, {transform_indices = @transform_2, window_bounds = array<i64: 1, 8, 128>}]} {
    %c0_i32 = arith.constant 0 : i32
    %0 = arith.cmpi eq, %arg1, %c0_i32 : i32
    %1 = arith.extui %0 : i1 to i32
    %c0_i32_0 = arith.constant 0 : i32
    %2 = arith.cmpi ne, %1, %c0_i32_0 : i32
    scf.if %2 {
      %cst = arith.constant 0.000000e+00 : f32
      %13 = vector.broadcast %cst : f32 to vector<1x8x128xf32>
      %c0 = arith.constant 0 : index
      %c0_4 = arith.constant 0 : index
      %c0_5 = arith.constant 0 : index
      %14 = vector.load %arg4[%c0, %c0_4, %c0_5] : memref<1x8x128xf32, #tpu.memory_space<vmem>>, vector<1x8x128xf32>
      tpu.vector_store %arg4[%c0, %c0_4, %c0_5], %13 {strides = array<i32>} : memref<1x8x128xf32, #tpu.memory_space<vmem>>, vector<1x8x128xf32>,
    } else {
    }
    %c1_i32 = arith.constant 1 : i32
    %3 = arith.muli %arg0, %c1_i32 : i32
    %4 = arith.addi %3, %arg1 : i32
    %c512_i32 = arith.constant 512 : i32
    %5 = arith.muli %4, %c512_i32 : i32
    %c512_i32_1 = arith.constant 512 : i32
    %6 = arith.addi %5, %c512_i32_1 : i32
    %c16_i32 = arith.constant 16 : i32
    %7 = arith.cmpi sle, %6, %c16_i32 : i32
    %8 = arith.extui %7 : i1 to i32
    %c0_i32_2 = arith.constant 0 : i32
    %9 = arith.cmpi ne, %8, %c0_i32_2 : i32
    scf.if %9 {
      %c0_i32_4 = arith.constant 0 : i32
      %c1_i32_5 = arith.constant 1 : i32
      %13 = arith.muli %c0_i32_4, %c1_i32_5 : i32
      %c0_i32_6 = arith.constant 0 : i32
      %14 = arith.addi %c0_i32_6, %13 : i32
      %c512_i32_7 = arith.constant 512 : i32
      %15 = arith.muli %14, %c512_i32_7 : i32
      %16 = tpu.assume_multiple %15, 512 : i32
      %17 = arith.index_cast %16 : i32 to index
      %c0 = arith.constant 0 : index
      %18 = vector.load %arg2[%17, %c0] : memref<512x128xf32, #tpu.memory_space<vmem>>, vector<512x128xf32>
      %19 = arith.index_cast %16 : i32 to index
      %c0_8 = arith.constant 0 : index
      %20 = vector.load %arg3[%19, %c0_8] : memref<512x128xf32, #tpu.memory_space<vmem>>, vector<512x128xf32>
      %21 = arith.subf %20, %18 : vector<512x128xf32>
      %22 = arith.mulf %21, %21 : vector<512x128xf32>
      %cst = arith.constant -1.562500e-02 : f32
      %23 = vector.broadcast %cst : f32 to vector<512x128xf32>
      %24 = arith.mulf %22, %23 : vector<512x128xf32>
      %25 = math.exp %24 : vector<512x128xf32>
      %cst_9 = arith.constant 1.000000e+00 : f32
      %26 = vector.broadcast %cst_9 : f32 to vector<512x128xf32>
      %27 = arith.subf %26, %25 : vector<512x128xf32>
      %c0_10 = arith.constant 0 : index
      %c0_11 = arith.constant 0 : index
      %c0_12 = arith.constant 0 : index
      %28 = vector.load %arg4[%c0_10, %c0_11, %c0_12] : memref<1x8x128xf32, #tpu.memory_space<vmem>>, vector<1x8x128xf32>
      %29 = vector.shape_cast %28 : vector<1x8x128xf32> to vector<8x128xf32>
      %30 = vector.shape_cast %27 : vector<512x128xf32> to vector<64x8x128xf32>
      %cst_13 = arith.constant dense<0.000000e+00> : vector<8x128xf32>
      %31 = vector.multi_reduction <add>, %30, %cst_13 [0] : vector<64x8x128xf32> to vector<8x128xf32>
      %32 = arith.addf %29, %31 : vector<8x128xf32>
      %c0_14 = arith.constant 0 : index
      %c0_15 = arith.constant 0 : index
      %c0_16 = arith.constant 0 : index
      %33 = vector.load %arg4[%c0_14, %c0_15, %c0_16] : memref<1x8x128xf32, #tpu.memory_space<vmem>>, vector<1x8x128xf32>
      %34 = vector.shape_cast %33 : vector<1x8x128xf32> to vector<8x128xf32>
      %35 = vector.shape_cast %32 : vector<8x128xf32> to vector<1x8x128xf32>
      tpu.vector_store %arg4[%c0_14, %c0_15, %c0_16], %35 {strides = array<i32>} : memref<1x8x128xf32, #tpu.memory_space<vmem>>, vector<1x8x128xf32>,
      %c1_i32_17 = arith.constant 1 : i32
    } else {
    }
    %true = arith.constant true
    %10 = arith.xori %7, %true : i1
    %11 = arith.extui %10 : i1 to i32
    %c0_i32_3 = arith.constant 0 : i32
    %12 = arith.cmpi ne, %11, %c0_i32_3 : i32
    scf.if %12 {
      %c0_i32_4 = arith.constant 0 : i32
      %c1_i32_5 = arith.constant 1 : i32
      %13 = arith.muli %c0_i32_4, %c1_i32_5 : i32
      %c0_i32_6 = arith.constant 0 : i32
      %14 = arith.addi %c0_i32_6, %13 : i32
      %c512_i32_7 = arith.constant 512 : i32
      %15 = arith.muli %14, %c512_i32_7 : i32
      %16 = tpu.assume_multiple %15, 512 : i32
      %17 = arith.index_cast %16 : i32 to index
      %c0 = arith.constant 0 : index
      %18 = vector.load %arg2[%17, %c0] : memref<512x128xf32, #tpu.memory_space<vmem>>, vector<512x128xf32>
      %19 = arith.index_cast %16 : i32 to index
      %c0_8 = arith.constant 0 : index
      %20 = vector.load %arg3[%19, %c0_8] : memref<512x128xf32, #tpu.memory_space<vmem>>, vector<512x128xf32>
      %21 = arith.subf %20, %18 : vector<512x128xf32>
      %22 = arith.addi %5, %16 : i32
      %23 = tpu.iota {dimensions = array<i32: 0>} : vector<512x1xi32>
      %24 = vector.broadcast %22 : i32 to vector<512x1xi32>
      %25 = arith.addi %24, %23 : vector<512x1xi32>
      %c16_i32_9 = arith.constant 16 : i32
      %26 = vector.broadcast %c16_i32_9 : i32 to vector<512x1xi32>
      %27 = arith.cmpi slt, %25, %26 : vector<512x1xi32>
      %cst = arith.constant 0.000000e+00 : f32
      %28 = vector.shape_cast %27 : vector<512x1xi1> to vector<512x1xi1>
      %29 = vector.broadcast %28 : vector<512x1xi1> to vector<512x128xi1>
      %30 = vector.broadcast %cst : f32 to vector<512x128xf32>
      %31 = arith.select %29, %21, %30 : vector<512x128xi1>, vector<512x128xf32>
      %32 = arith.mulf %31, %31 : vector<512x128xf32>
      %cst_10 = arith.constant -1.562500e-02 : f32
      %33 = vector.broadcast %cst_10 : f32 to vector<512x128xf32>
      %34 = arith.mulf %32, %33 : vector<512x128xf32>
      %35 = math.exp %34 : vector<512x128xf32>
      %cst_11 = arith.constant 1.000000e+00 : f32
      %36 = vector.broadcast %cst_11 : f32 to vector<512x128xf32>
      %37 = arith.subf %36, %35 : vector<512x128xf32>
      %c0_12 = arith.constant 0 : index
      %c0_13 = arith.constant 0 : index
      %c0_14 = arith.constant 0 : index
      %38 = vector.load %arg4[%c0_12, %c0_13, %c0_14] : memref<1x8x128xf32, #tpu.memory_space<vmem>>, vector<1x8x128xf32>
      %39 = vector.shape_cast %38 : vector<1x8x128xf32> to vector<8x128xf32>
      %40 = vector.shape_cast %37 : vector<512x128xf32> to vector<64x8x128xf32>
      %cst_15 = arith.constant dense<0.000000e+00> : vector<8x128xf32>
      %41 = vector.multi_reduction <add>, %40, %cst_15 [0] : vector<64x8x128xf32> to vector<8x128xf32>
      %42 = arith.addf %39, %41 : vector<8x128xf32>
      %c0_16 = arith.constant 0 : index
      %c0_17 = arith.constant 0 : index
      %c0_18 = arith.constant 0 : index
      %43 = vector.load %arg4[%c0_16, %c0_17, %c0_18] : memref<1x8x128xf32, #tpu.memory_space<vmem>>, vector<1x8x128xf32>
      %44 = vector.shape_cast %43 : vector<1x8x128xf32> to vector<8x128xf32>
      %45 = vector.shape_cast %42 : vector<8x128xf32> to vector<1x8x128xf32>
      tpu.vector_store %arg4[%c0_16, %c0_17, %c0_18], %45 {strides = array<i32>} : memref<1x8x128xf32, #tpu.memory_space<vmem>>, vector<1x8x128xf32>,
      %c1_i32_19 = arith.constant 1 : i32
    } else {
    }
    return
  }
  func.func @transform_0(%arg0: i32, %arg1: i32) -> (i32, i32) {
    %c1_i32 = arith.constant 1 : i32
    %0 = arith.muli %arg0, %c1_i32 : i32
    %1 = arith.addi %0, %arg1 : i32
    %c0_i32 = arith.constant 0 : i32
    %2 = arith.minsi %1, %c0_i32 : i32
    %c0_i32_0 = arith.constant 0 : i32
    %c0_i32_1 = arith.constant 0 : i32
    return %2, %c0_i32_0 : i32, i32
  }
  func.func @transform_1(%arg0: i32, %arg1: i32) -> (i32, i32) {
    %c1_i32 = arith.constant 1 : i32
    %0 = arith.muli %arg0, %c1_i32 : i32
    %1 = arith.addi %0, %arg1 : i32
    %c0_i32 = arith.constant 0 : i32
    %2 = arith.minsi %1, %c0_i32 : i32
    %c0_i32_0 = arith.constant 0 : i32
    %c0_i32_1 = arith.constant 0 : i32
    return %2, %c0_i32_0 : i32, i32
  }
  func.func @transform_2(%arg0: i32, %arg1: i32) -> (i32, i32, i32) {
    %c0_i32 = arith.constant 0 : i32
    %c0_i32_0 = arith.constant 0 : i32
    %c0_i32_1 = arith.constant 0 : i32
    return %arg0, %c0_i32, %c0_i32_0 : i32, i32, i32
  }
}

</mosaic_0001>

<llo_original>
// kernel: tpu_custom_call.1
$region0: #{tpu_custom_call.1}
  #allocation0 [shape = 'u32[]', space=smem, size = 0x4, offset = 0x4, fixed_abs, tag = 'smem constant byte address 0x4 - core index']
  #allocation1 [shape = 'u32[144,128]{1,0:T(1,128)}', space=vmem, size = 0x12000, scoped, tag = 'internal scratch']
  %s0 = inlined_call_operand.hbm [shape: f32[16,128], index: 0, kind: input, shape index: {}]
  %s1 = inlined_call_operand.hbm [shape: f32[16,128], index: 1, kind: input, shape index: {}]
  %s2 = inlined_call_operand.hbm [shape: f32[1,8,128], index: 2, kind: output, shape index: {}]
  %s3 = sld [smem:[#allocation0]]
  $region38: #{tpu_custom_call.1} parent=0
    _
  %s5 = ssub.s32 1, %s3
  %s6 = scalar_select 0, %s5, %s3
  $region1: #{tpu_custom_call.1} parent=0
    #allocation2 [shape = 'u8[262144]{0}', space=vmem, size = 0x40000, scoped, tag = 'input window, operand 0, single buffered']
    #allocation3 [shape = 's32[1]{0}', space=sflag, size = 0x4, scoped, tag = 'scoped memory for tpu_custom_call.1']
    #allocation4 [shape = 's32[1]{0}', space=sflag, size = 0x4, scoped, tag = 'scoped memory for tpu_custom_call.1']
    #allocation5 [shape = 'u8[262144]{0}', space=vmem, size = 0x40000, scoped, tag = 'input window, operand 1, single buffered']
    #allocation6 [shape = 's32[1]{0}', space=sflag, size = 0x4, scoped, tag = 'scoped memory for tpu_custom_call.1']
    #allocation7 [shape = 'u8[4096]{0}', space=vmem, size = 0x1000, scoped, tag = 'output window, operand 0, single buffered']
    %7 = vsyncpa [#allocation3], 0
    %8 = vsyncpa [#allocation6], 0
    %9 = vsyncpa [#allocation4], 0
    // Predicated region
    $region2: #{tpu_custom_call.1} parent=1 // pred_check
      _
    $region3: #{tpu_custom_call.1} parent=1 // pred_check_branch
      %11 = sbr.rel (0) target = $region5
    $region4: #{tpu_custom_call.1} parent=1 // pred_region
      %s12 = sadd.s32 0, 0
      %p13 = scmp.lt.s32.totalorder %s12, 0
      %s14 = scalar_select %p13, %s12, 0
      %s15 = smul.u32 64, %s14
      %s16 = ssub.s32 2, %s15
      %s17 = smul.u32 128, %s16
      %s19 = ssub.s32 8192, %s17
      %20 = vsyncadd [#allocation3], %s19
      %p21 = scmp.ne.s32.totalorder 0, %s17
      %s22 = smul.addr %s15, 128
      %s23 = scalar_lea.hbm %s0, %s22
      %s24 = smul.u32 8, %s16
      %s25 = sshll.u32 [#allocation2], 4
      %s26 = int_to_ptr.vmem [resolvable:$true] %s25
      %s27 = sshll.u32 %s24, 4
      %31 = dma.hbm_to_vmem [thread:$0]  (%p21), %s23, %s27, %s26, [#allocation3], 128, 128, 8
    $region5: #{tpu_custom_call.1} parent=1 // pred_fallthru
      _
    // Predicated region
    $region6: #{tpu_custom_call.1} parent=1 // pred_check
      _
    $region7: #{tpu_custom_call.1} parent=1 // pred_check_branch
      %33 = sbr.rel (0) target = $region9
    $region8: #{tpu_custom_call.1} parent=1 // pred_region
      %s34 = sadd.s32 0, 0
      %p35 = scmp.lt.s32.totalorder %s34, 0
      %s36 = scalar_select %p35, %s34, 0
      %s37 = smul.u32 64, %s36
      %s38 = ssub.s32 2, %s37
      %s39 = smul.u32 128, %s38
      %s41 = ssub.s32 8192, %s39
      %42 = vsyncadd [#allocation6], %s41
      %p43 = scmp.ne.s32.totalorder 0, %s39
      %s44 = smul.addr %s37, 128
      %s45 = scalar_lea.hbm %s1, %s44
      %s46 = smul.u32 8, %s38
      %s47 = sshll.u32 [#allocation5], 4
      %s48 = int_to_ptr.vmem [resolvable:$true] %s47
      %s49 = sshll.u32 %s46, 4
      %53 = dma.hbm_to_vmem [thread:$0]  (%p43), %s45, %s49, %s48, [#allocation6], 128, 128, 8
    $region9: #{tpu_custom_call.1} parent=1 // pred_fallthru
      _
    // Predicated region
    $region10: #{tpu_custom_call.1} parent=1 // pred_check
      _
    $region11: #{tpu_custom_call.1} parent=1 // pred_check_branch
      %55 = sbr.rel (0) target = $region13
    $region12: #{tpu_custom_call.1} parent=1 // pred_region
      %56 = dma.done [#allocation3], 8192
    $region13: #{tpu_custom_call.1} parent=1 // pred_fallthru
      _
    // Predicated region
    $region14: #{tpu_custom_call.1} parent=1 // pred_check
      _
    $region15: #{tpu_custom_call.1} parent=1 // pred_check_branch
      %58 = sbr.rel (0) target = $region17
    $region16: #{tpu_custom_call.1} parent=1 // pred_region
      %59 = dma.done [#allocation6], 8192
    $region17: #{tpu_custom_call.1} parent=1 // pred_fallthru
      _
    %s60 = sadd.s32 0, 0
    %p61 = scmp.lt.s32.totalorder %s60, 0
    %s62 = scalar_select %p61, %s60, 0
    %s63 = smul.u32 64, %s62
    %s64 = ssub.s32 2, %s63
    %s65 = smul.u32 128, %s64
    %s66 = sadd.s32 0, 0
    %p67 = scmp.lt.s32.totalorder %s66, 0
    %s68 = scalar_select %p67, %s66, 0
    %s69 = smul.u32 64, %s68
    %s70 = ssub.s32 2, %s69
    %s71 = smul.u32 128, %s70
    %p72 = scmp.eq.s32.totalorder 0, 0
    // Predicated region
    $region18: #{tpu_custom_call.1} parent=1 // pred_check
      %p73 = pneg %p72
    $region19: #{tpu_custom_call.1} parent=1 // pred_check_branch
      %75 = sbr.rel (%p73) target = $region21
    $region20: #{tpu_custom_call.1} parent=1 // pred_region
      %76 = vst [vmem:[#allocation7] sm:$0xff] 0.0
    $region21: #{tpu_custom_call.1} parent=1 // pred_fallthru
      _
    %s77 = sadd.s32 0, 0
    %s78 = smul.u32 %s77, 512
    %s79 = sadd.s32 %s78, 512
    %p80 = scmp.le.s32.totalorder %s79, 16
    // Predicated region
    $region22: #{tpu_custom_call.1} parent=1 // pred_check
      %p81 = pneg %p80
    $region23: #{tpu_custom_call.1} parent=1 // pred_check_branch
      %83 = sbr.rel (%p81) target = $region25
    $region24: #{tpu_custom_call.1} parent=1 // pred_region
      %v84 = vld [vmem:[#allocation2] sm:$0xff]
      %v85 = vld [vmem:[#allocation2 + $0x8] sm:$0xff]
      %v86 = vld [vmem:[#allocation2 + $0x10] sm:$0xff]
      %v87 = vld [vmem:[#allocation2 + $0x18] sm:$0xff]
      %v88 = vld [vmem:[#allocation2 + $0x20] sm:$0xff]
      %v89 = vld [vmem:[#allocation2 + $0x28] sm:$0xff]
      %v90 = vld [vmem:[#allocation2 + $0x30] sm:$0xff]
      %v91 = vld [vmem:[#allocation2 + $0x38] sm:$0xff]
      %v92 = vld [vmem:[#allocation2 + $0x40] sm:$0xff]
      %v93 = vld [vmem:[#allocation2 + $0x48] sm:$0xff]
      %v94 = vld [vmem:[#allocation2 + $0x50] sm:$0xff]
      %v95 = vld [vmem:[#allocation2 + $0x58] sm:$0xff]
      %v96 = vld [vmem:[#allocation2 + $0x60] sm:$0xff]
      %v97 = vld [vmem:[#allocation2 + $0x68] sm:$0xff]
      %v98 = vld [vmem:[#allocation2 + $0x70] sm:$0xff]
      %v99 = vld [vmem:[#allocation2 + $0x78] sm:$0xff]
      %v100 = vld [vmem:[#allocation2 + $0x80] sm:$0xff]
      %v101 = vld [vmem:[#allocation2 + $0x88] sm:$0xff]
      %v102 = vld [vmem:[#allocation2 + $0x90] sm:$0xff]
      %v103 = vld [vmem:[#allocation2 + $0x98] sm:$0xff]
      %v104 = vld [vmem:[#allocation2 + $0xa0] sm:$0xff]
      %v105 = vld [vmem:[#allocation2 + $0xa8] sm:$0xff]
      %v106 = vld [vmem:[#allocation2 + $0xb0] sm:$0xff]
      %v107 = vld [vmem:[#allocation2 + $0xb8] sm:$0xff]
      %v108 = vld [vmem:[#allocation2 + $0xc0] sm:$0xff]
      %v109 = vld [vmem:[#allocation2 + $0xc8] sm:$0xff]
      %v110 = vld [vmem:[#allocation2 + $0xd0] sm:$0xff]
      %v111 = vld [vmem:[#allocation2 + $0xd8] sm:$0xff]
      %v112 = vld [vmem:[#allocation2 + $0xe0] sm:$0xff]
      %v113 = vld [vmem:[#allocation2 + $0xe8] sm:$0xff]
      %v114 = vld [vmem:[#allocation2 + $0xf0] sm:$0xff]
      %v115 = vld [vmem:[#allocation2 + $0xf8] sm:$0xff]
      %v116 = vld [vmem:[#allocation2 + $0x100] sm:$0xff]
      %v117 = vld [vmem:[#allocation2 + $0x108] sm:$0xff]
      %v118 = vld [vmem:[#allocation2 + $0x110] sm:$0xff]
      %v119 = vld [vmem:[#allocation2 + $0x118] sm:$0xff]
      %v120 = vld [vmem:[#allocation2 + $0x120] sm:$0xff]
      %v121 = vld [vmem:[#allocation2 + $0x128] sm:$0xff]
      %v122 = vld [vmem:[#allocation2 + $0x130] sm:$0xff]
      %v123 = vld [vmem:[#allocation2 + $0x138] sm:$0xff]
      %v124 = vld [vmem:[#allocation2 + $0x140] sm:$0xff]
      %v125 = vld [vmem:[#allocation2 + $0x148] sm:$0xff]
      %v126 = vld [vmem:[#allocation2 + $0x150] sm:$0xff]
      %v127 = vld [vmem:[#allocation2 + $0x158] sm:$0xff]
      %v128 = vld [vmem:[#allocation2 + $0x160] sm:$0xff]
      %v129 = vld [vmem:[#allocation2 + $0x168] sm:$0xff]
      %v130 = vld [vmem:[#allocation2 + $0x170] sm:$0xff]
      %v131 = vld [vmem:[#allocation2 + $0x178] sm:$0xff]
      %v132 = vld [vmem:[#allocation2 + $0x180] sm:$0xff]
      %v133 = vld [vmem:[#allocation2 + $0x188] sm:$0xff]
      %v134 = vld [vmem:[#allocation2 + $0x190] sm:$0xff]
      %v135 = vld [vmem:[#allocation2 + $0x198] sm:$0xff]
      %v136 = vld [vmem:[#allocation2 + $0x1a0] sm:$0xff]
      %v137 = vld [vmem:[#allocation2 + $0x1a8] sm:$0xff]
      %v138 = vld [vmem:[#allocation2 + $0x1b0] sm:$0xff]
      %v139 = vld [vmem:[#allocation2 + $0x1b8] sm:$0xff]
      %v140 = vld [vmem:[#allocation2 + $0x1c0] sm:$0xff]
      %v141 = vld [vmem:[#allocation2 + $0x1c8] sm:$0xff]
      %v142 = vld [vmem:[#allocation2 + $0x1d0] sm:$0xff]
      %v143 = vld [vmem:[#allocation2 + $0x1d8] sm:$0xff]
      %v144 = vld [vmem:[#allocation2 + $0x1e0] sm:$0xff]
      %v145 = vld [vmem:[#allocation2 + $0x1e8] sm:$0xff]
      %v146 = vld [vmem:[#allocation2 + $0x1f0] sm:$0xff]
      %v147 = vld [vmem:[#allocation2 + $0x1f8] sm:$0xff]
      %v148 = vld [vmem:[#allocation5] sm:$0xff]
      %v149 = vld [vmem:[#allocation5 + $0x8] sm:$0xff]
      %v150 = vld [vmem:[#allocation5 + $0x10] sm:$0xff]
      %v151 = vld [vmem:[#allocation5 + $0x18] sm:$0xff]
      %v152 = vld [vmem:[#allocation5 + $0x20] sm:$0xff]
      %v153 = vld [vmem:[#allocation5 + $0x28] sm:$0xff]
      %v154 = vld [vmem:[#allocation5 + $0x30] sm:$0xff]
      %v155 = vld [vmem:[#allocation5 + $0x38] sm:$0xff]
      %v156 = vld [vmem:[#allocation5 + $0x40] sm:$0xff]
      %v157 = vld [vmem:[#allocation5 + $0x48] sm:$0xff]
      %v158 = vld [vmem:[#allocation5 + $0x50] sm:$0xff]
      %v159 = vld [vmem:[#allocation5 + $0x58] sm:$0xff]
      %v160 = vld [vmem:[#allocation5 + $0x60] sm:$0xff]
      %v161 = vld [vmem:[#allocation5 + $0x68] sm:$0xff]
      %v162 = vld [vmem:[#allocation5 + $0x70] sm:$0xff]
      %v163 = vld [vmem:[#allocation5 + $0x78] sm:$0xff]
      %v164 = vld [vmem:[#allocation5 + $0x80] sm:$0xff]
      %v165 = vld [vmem:[#allocation5 + $0x88] sm:$0xff]
      %v166 = vld [vmem:[#allocation5 + $0x90] sm:$0xff]
      %v167 = vld [vmem:[#allocation5 + $0x98] sm:$0xff]
      %v168 = vld [vmem:[#allocation5 + $0xa0] sm:$0xff]
      %v169 = vld [vmem:[#allocation5 + $0xa8] sm:$0xff]
      %v170 = vld [vmem:[#allocation5 + $0xb0] sm:$0xff]
      %v171 = vld [vmem:[#allocation5 + $0xb8] sm:$0xff]
      %v172 = vld [vmem:[#allocation5 + $0xc0] sm:$0xff]
      %v173 = vld [vmem:[#allocation5 + $0xc8] sm:$0xff]
      %v174 = vld [vmem:[#allocation5 + $0xd0] sm:$0xff]
      %v175 = vld [vmem:[#allocation5 + $0xd8] sm:$0xff]
      %v176 = vld [vmem:[#allocation5 + $0xe0] sm:$0xff]
      %v177 = vld [vmem:[#allocation5 + $0xe8] sm:$0xff]
      %v178 = vld [vmem:[#allocation5 + $0xf0] sm:$0xff]
      %v179 = vld [vmem:[#allocation5 + $0xf8] sm:$0xff]
      %v180 = vld [vmem:[#allocation5 + $0x100] sm:$0xff]
      %v181 = vld [vmem:[#allocation5 + $0x108] sm:$0xff]
      %v182 = vld [vmem:[#allocation5 + $0x110] sm:$0xff]
      %v183 = vld [vmem:[#allocation5 + $0x118] sm:$0xff]
      %v184 = vld [vmem:[#allocation5 + $0x120] sm:$0xff]
      %v185 = vld [vmem:[#allocation5 + $0x128] sm:$0xff]
      %v186 = vld [vmem:[#allocation5 + $0x130] sm:$0xff]
      %v187 = vld [vmem:[#allocation5 + $0x138] sm:$0xff]
      %v188 = vld [vmem:[#allocation5 + $0x140] sm:$0xff]
      %v189 = vld [vmem:[#allocation5 + $0x148] sm:$0xff]
      %v190 = vld [vmem:[#allocation5 + $0x150] sm:$0xff]
      %v191 = vld [vmem:[#allocation5 + $0x158] sm:$0xff]
      %v192 = vld [vmem:[#allocation5 + $0x160] sm:$0xff]
      %v193 = vld [vmem:[#allocation5 + $0x168] sm:$0xff]
      %v194 = vld [vmem:[#allocation5 + $0x170] sm:$0xff]
      %v195 = vld [vmem:[#allocation5 + $0x178] sm:$0xff]
      %v196 = vld [vmem:[#allocation5 + $0x180] sm:$0xff]
      %v197 = vld [vmem:[#allocation5 + $0x188] sm:$0xff]
      %v198 = vld [vmem:[#allocation5 + $0x190] sm:$0xff]
      %v199 = vld [vmem:[#allocation5 + $0x198] sm:$0xff]
      %v200 = vld [vmem:[#allocation5 + $0x1a0] sm:$0xff]
      %v201 = vld [vmem:[#allocation5 + $0x1a8] sm:$0xff]
      %v202 = vld [vmem:[#allocation5 + $0x1b0] sm:$0xff]
      %v203 = vld [vmem:[#allocation5 + $0x1b8] sm:$0xff]
      %v204 = vld [vmem:[#allocation5 + $0x1c0] sm:$0xff]
      %v205 = vld [vmem:[#allocation5 + $0x1c8] sm:$0xff]
      %v206 = vld [vmem:[#allocation5 + $0x1d0] sm:$0xff]
      %v207 = vld [vmem:[#allocation5 + $0x1d8] sm:$0xff]
      %v208 = vld [vmem:[#allocation5 + $0x1e0] sm:$0xff]
      %v209 = vld [vmem:[#allocation5 + $0x1e8] sm:$0xff]
      %v210 = vld [vmem:[#allocation5 + $0x1f0] sm:$0xff]
      %v211 = vld [vmem:[#allocation5 + $0x1f8] sm:$0xff]
      %v212 = vsub.f32 %v148, %v84
      %v213 = vsub.f32 %v149, %v85
      %v214 = vsub.f32 %v150, %v86
      %v215 = vsub.f32 %v151, %v87
      %v216 = vsub.f32 %v152, %v88
      %v217 = vsub.f32 %v153, %v89
      %v218 = vsub.f32 %v154, %v90
      %v219 = vsub.f32 %v155, %v91
      %v220 = vsub.f32 %v156, %v92
      %v221 = vsub.f32 %v157, %v93
      %v222 = vsub.f32 %v158, %v94
      %v223 = vsub.f32 %v159, %v95
      %v224 = vsub.f32 %v160, %v96
      %v225 = vsub.f32 %v161, %v97
      %v226 = vsub.f32 %v162, %v98
      %v227 = vsub.f32 %v163, %v99
      %v228 = vsub.f32 %v164, %v100
      %v229 = vsub.f32 %v165, %v101
      %v230 = vsub.f32 %v166, %v102
      %v231 = vsub.f32 %v167, %v103
      %v232 = vsub.f32 %v168, %v104
      %v233 = vsub.f32 %v169, %v105
      %v234 = vsub.f32 %v170, %v106
      %v235 = vsub.f32 %v171, %v107
      %v236 = vsub.f32 %v172, %v108
      %v237 = vsub.f32 %v173, %v109
      %v238 = vsub.f32 %v174, %v110
      %v239 = vsub.f32 %v175, %v111
      %v240 = vsub.f32 %v176, %v112
      %v241 = vsub.f32 %v177, %v113
      %v242 = vsub.f32 %v178, %v114
      %v243 = vsub.f32 %v179, %v115
      %v244 = vsub.f32 %v180, %v116
      %v245 = vsub.f32 %v181, %v117
      %v246 = vsub.f32 %v182, %v118
      %v247 = vsub.f32 %v183, %v119
      %v248 = vsub.f32 %v184, %v120
      %v249 = vsub.f32 %v185, %v121
      %v250 = vsub.f32 %v186, %v122
      %v251 = vsub.f32 %v187, %v123
      %v252 = vsub.f32 %v188, %v124
      %v253 = vsub.f32 %v189, %v125
      %v254 = vsub.f32 %v190, %v126
      %v255 = vsub.f32 %v191, %v127
      %v256 = vsub.f32 %v192, %v128
      %v257 = vsub.f32 %v193, %v129
      %v258 = vsub.f32 %v194, %v130
      %v259 = vsub.f32 %v195, %v131
      %v260 = vsub.f32 %v196, %v132
      %v261 = vsub.f32 %v197, %v133
      %v262 = vsub.f32 %v198, %v134
      %v263 = vsub.f32 %v199, %v135
      %v264 = vsub.f32 %v200, %v136
      %v265 = vsub.f32 %v201, %v137
      %v266 = vsub.f32 %v202, %v138
      %v267 = vsub.f32 %v203, %v139
      %v268 = vsub.f32 %v204, %v140
      %v269 = vsub.f32 %v205, %v141
      %v270 = vsub.f32 %v206, %v142
      %v271 = vsub.f32 %v207, %v143
      %v272 = vsub.f32 %v208, %v144
      %v273 = vsub.f32 %v209, %v145
      %v274 = vsub.f32 %v210, %v146
      %v275 = vsub.f32 %v211, %v147
      %v276 = vmul.f32 %v212, %v212
      %v277 = vmul.f32 %v213, %v213
      %v278 = vmul.f32 %v214, %v214
      %v279 = vmul.f32 %v215, %v215
      %v280 = vmul.f32 %v216, %v216
      %v281 = vmul.f32 %v217, %v217
      %v282 = vmul.f32 %v218, %v218
      %v283 = vmul.f32 %v219, %v219
      %v284 = vmul.f32 %v220, %v220
      %v285 = vmul.f32 %v221, %v221
      %v286 = vmul.f32 %v222, %v222
      %v287 = vmul.f32 %v223, %v223
      %v288 = vmul.f32 %v224, %v224
      %v289 = vmul.f32 %v225, %v225
      %v290 = vmul.f32 %v226, %v226
      %v291 = vmul.f32 %v227, %v227
      %v292 = vmul.f32 %v228, %v228
      %v293 = vmul.f32 %v229, %v229
      %v294 = vmul.f32 %v230, %v230
      %v295 = vmul.f32 %v231, %v231
      %v296 = vmul.f32 %v232, %v232
      %v297 = vmul.f32 %v233, %v233
      %v298 = vmul.f32 %v234, %v234
      %v299 = vmul.f32 %v235, %v235
      %v300 = vmul.f32 %v236, %v236
      %v301 = vmul.f32 %v237, %v237
      %v302 = vmul.f32 %v238, %v238
      %v303 = vmul.f32 %v239, %v239
      %v304 = vmul.f32 %v240, %v240
      %v305 = vmul.f32 %v241, %v241
      %v306 = vmul.f32 %v242, %v242
      %v307 = vmul.f32 %v243, %v243
      %v308 = vmul.f32 %v244, %v244
      %v309 = vmul.f32 %v245, %v245
      %v310 = vmul.f32 %v246, %v246
      %v311 = vmul.f32 %v247, %v247
      %v312 = vmul.f32 %v248, %v248
      %v313 = vmul.f32 %v249, %v249
      %v314 = vmul.f32 %v250, %v250
      %v315 = vmul.f32 %v251, %v251
      %v316 = vmul.f32 %v252, %v252
      %v317 = vmul.f32 %v253, %v253
      %v318 = vmul.f32 %v254, %v254
      %v319 = vmul.f32 %v255, %v255
      %v320 = vmul.f32 %v256, %v256
      %v321 = vmul.f32 %v257, %v257
      %v322 = vmul.f32 %v258, %v258
      %v323 = vmul.f32 %v259, %v259
      %v324 = vmul.f32 %v260, %v260
      %v325 = vmul.f32 %v261, %v261
      %v326 = vmul.f32 %v262, %v262
      %v327 = vmul.f32 %v263, %v263
      %v328 = vmul.f32 %v264, %v264
      %v329 = vmul.f32 %v265, %v265
      %v330 = vmul.f32 %v266, %v266
      %v331 = vmul.f32 %v267, %v267
      %v332 = vmul.f32 %v268, %v268
      %v333 = vmul.f32 %v269, %v269
      %v334 = vmul.f32 %v270, %v270
      %v335 = vmul.f32 %v271, %v271
      %v336 = vmul.f32 %v272, %v272
      %v337 = vmul.f32 %v273, %v273
      %v338 = vmul.f32 %v274, %v274
      %v339 = vmul.f32 %v275, %v275
      %v340 = vmul.f32 %v276, -0.015625
      %v341 = vmul.f32 %v277, -0.015625
      %v342 = vmul.f32 %v278, -0.015625
      %v343 = vmul.f32 %v279, -0.015625
      %v344 = vmul.f32 %v280, -0.015625
      %v345 = vmul.f32 %v281, -0.015625
      %v346 = vmul.f32 %v282, -0.015625
      %v347 = vmul.f32 %v283, -0.015625
      %v348 = vmul.f32 %v284, -0.015625
      %v349 = vmul.f32 %v285, -0.015625
      %v350 = vmul.f32 %v286, -0.015625
      %v351 = vmul.f32 %v287, -0.015625
      %v352 = vmul.f32 %v288, -0.015625
      %v353 = vmul.f32 %v289, -0.015625
      %v354 = vmul.f32 %v290, -0.015625
      %v355 = vmul.f32 %v291, -0.015625
      %v356 = vmul.f32 %v292, -0.015625
      %v357 = vmul.f32 %v293, -0.015625
      %v358 = vmul.f32 %v294, -0.015625
      %v359 = vmul.f32 %v295, -0.015625
      %v360 = vmul.f32 %v296, -0.015625
      %v361 = vmul.f32 %v297, -0.015625
      %v362 = vmul.f32 %v298, -0.015625
      %v363 = vmul.f32 %v299, -0.015625
      %v364 = vmul.f32 %v300, -0.015625
      %v365 = vmul.f32 %v301, -0.015625
      %v366 = vmul.f32 %v302, -0.015625
      %v367 = vmul.f32 %v303, -0.015625
      %v368 = vmul.f32 %v304, -0.015625
      %v369 = vmul.f32 %v305, -0.015625
      %v370 = vmul.f32 %v306, -0.015625
      %v371 = vmul.f32 %v307, -0.015625
      %v372 = vmul.f32 %v308, -0.015625
      %v373 = vmul.f32 %v309, -0.015625
      %v374 = vmul.f32 %v310, -0.015625
      %v375 = vmul.f32 %v311, -0.015625
      %v376 = vmul.f32 %v312, -0.015625
      %v377 = vmul.f32 %v313, -0.015625
      %v378 = vmul.f32 %v314, -0.015625
      %v379 = vmul.f32 %v315, -0.015625
      %v380 = vmul.f32 %v316, -0.015625
      %v381 = vmul.f32 %v317, -0.015625
      %v382 = vmul.f32 %v318, -0.015625
      %v383 = vmul.f32 %v319, -0.015625
      %v384 = vmul.f32 %v320, -0.015625
      %v385 = vmul.f32 %v321, -0.015625
      %v386 = vmul.f32 %v322, -0.015625
      %v387 = vmul.f32 %v323, -0.015625
      %v388 = vmul.f32 %v324, -0.015625
      %v389 = vmul.f32 %v325, -0.015625
      %v390 = vmul.f32 %v326, -0.015625
      %v391 = vmul.f32 %v327, -0.015625
      %v392 = vmul.f32 %v328, -0.015625
      %v393 = vmul.f32 %v329, -0.015625
      %v394 = vmul.f32 %v330, -0.015625
      %v395 = vmul.f32 %v331, -0.015625
      %v396 = vmul.f32 %v332, -0.015625
      %v397 = vmul.f32 %v333, -0.015625
      %v398 = vmul.f32 %v334, -0.015625
      %v399 = vmul.f32 %v335, -0.015625
      %v400 = vmul.f32 %v336, -0.015625
      %v401 = vmul.f32 %v337, -0.015625
      %v402 = vmul.f32 %v338, -0.015625
      %v403 = vmul.f32 %v339, -0.015625
      %v404 = vmul.f32 %v340, 1.442695
      %v405 = vpow.pop %v404
      %v406 = vmul.f32 %v341, 1.442695
      %v407 = vpow.pop %v406
      %v408 = vmul.f32 %v342, 1.442695
      %v409 = vpow.pop %v408
      %v410 = vmul.f32 %v343, 1.442695
      %v411 = vpow.pop %v410
      %v412 = vmul.f32 %v344, 1.442695
      %v413 = vpow.pop %v412
      %v414 = vmul.f32 %v345, 1.442695
      %v415 = vpow.pop %v414
      %v416 = vmul.f32 %v346, 1.442695
      %v417 = vpow.pop %v416
      %v418 = vmul.f32 %v347, 1.442695
      %v419 = vpow.pop %v418
      %v420 = vmul.f32 %v348, 1.442695
      %v421 = vpow.pop %v420
      %v422 = vmul.f32 %v349, 1.442695
      %v423 = vpow.pop %v422
      %v424 = vmul.f32 %v350, 1.442695
      %v425 = vpow.pop %v424
      %v426 = vmul.f32 %v351, 1.442695
      %v427 = vpow.pop %v426
      %v428 = vmul.f32 %v352, 1.442695
      %v429 = vpow.pop %v428
      %v430 = vmul.f32 %v353, 1.442695
      %v431 = vpow.pop %v430
      %v432 = vmul.f32 %v354, 1.442695
      %v433 = vpow.pop %v432
      %v434 = vmul.f32 %v355, 1.442695
      %v435 = vpow.pop %v434
      %v436 = vmul.f32 %v356, 1.442695
      %v437 = vpow.pop %v436
      %v438 = vmul.f32 %v357, 1.442695
      %v439 = vpow.pop %v438
      %v440 = vmul.f32 %v358, 1.442695
      %v441 = vpow.pop %v440
      %v442 = vmul.f32 %v359, 1.442695
      %v443 = vpow.pop %v442
      %v444 = vmul.f32 %v360, 1.442695
      %v445 = vpow.pop %v444
      %v446 = vmul.f32 %v361, 1.442695
      %v447 = vpow.pop %v446
      %v448 = vmul.f32 %v362, 1.442695
      %v449 = vpow.pop %v448
      %v450 = vmul.f32 %v363, 1.442695
      %v451 = vpow.pop %v450
      %v452 = vmul.f32 %v364, 1.442695
      %v453 = vpow.pop %v452
      %v454 = vmul.f32 %v365, 1.442695
      %v455 = vpow.pop %v454
      %v456 = vmul.f32 %v366, 1.442695
      %v457 = vpow.pop %v456
      %v458 = vmul.f32 %v367, 1.442695
      %v459 = vpow.pop %v458
      %v460 = vmul.f32 %v368, 1.442695
      %v461 = vpow.pop %v460
      %v462 = vmul.f32 %v369, 1.442695
      %v463 = vpow.pop %v462
      %v464 = vmul.f32 %v370, 1.442695
      %v465 = vpow.pop %v464
      %v466 = vmul.f32 %v371, 1.442695
      %v467 = vpow.pop %v466
      %v468 = vmul.f32 %v372, 1.442695
      %v469 = vpow.pop %v468
      %v470 = vmul.f32 %v373, 1.442695
      %v471 = vpow.pop %v470
      %v472 = vmul.f32 %v374, 1.442695
      %v473 = vpow.pop %v472
      %v474 = vmul.f32 %v375, 1.442695
      %v475 = vpow.pop %v474
      %v476 = vmul.f32 %v376, 1.442695
      %v477 = vpow.pop %v476
      %v478 = vmul.f32 %v377, 1.442695
      %v479 = vpow.pop %v478
      %v480 = vmul.f32 %v378, 1.442695
      %v481 = vpow.pop %v480
      %v482 = vmul.f32 %v379, 1.442695
      %v483 = vpow.pop %v482
      %v484 = vmul.f32 %v380, 1.442695
      %v485 = vpow.pop %v484
      %v486 = vmul.f32 %v381, 1.442695
      %v487 = vpow.pop %v486
      %v488 = vmul.f32 %v382, 1.442695
      %v489 = vpow.pop %v488
      %v490 = vmul.f32 %v383, 1.442695
      %v491 = vpow.pop %v490
      %v492 = vmul.f32 %v384, 1.442695
      %v493 = vpow.pop %v492
      %v494 = vmul.f32 %v385, 1.442695
      %v495 = vpow.pop %v494
      %v496 = vmul.f32 %v386, 1.442695
      %v497 = vpow.pop %v496
      %v498 = vmul.f32 %v387, 1.442695
      %v499 = vpow.pop %v498
      %v500 = vmul.f32 %v388, 1.442695
      %v501 = vpow.pop %v500
      %v502 = vmul.f32 %v389, 1.442695
      %v503 = vpow.pop %v502
      %v504 = vmul.f32 %v390, 1.442695
      %v505 = vpow.pop %v504
      %v506 = vmul.f32 %v391, 1.442695
      %v507 = vpow.pop %v506
      %v508 = vmul.f32 %v392, 1.442695
      %v509 = vpow.pop %v508
      %v510 = vmul.f32 %v393, 1.442695
      %v511 = vpow.pop %v510
      %v512 = vmul.f32 %v394, 1.442695
      %v513 = vpow.pop %v512
      %v514 = vmul.f32 %v395, 1.442695
      %v515 = vpow.pop %v514
      %v516 = vmul.f32 %v396, 1.442695
      %v517 = vpow.pop %v516
      %v518 = vmul.f32 %v397, 1.442695
      %v519 = vpow.pop %v518
      %v520 = vmul.f32 %v398, 1.442695
      %v521 = vpow.pop %v520
      %v522 = vmul.f32 %v399, 1.442695
      %v523 = vpow.pop %v522
      %v524 = vmul.f32 %v400, 1.442695
      %v525 = vpow.pop %v524
      %v526 = vmul.f32 %v401, 1.442695
      %v527 = vpow.pop %v526
      %v528 = vmul.f32 %v402, 1.442695
      %v529 = vpow.pop %v528
      %v530 = vmul.f32 %v403, 1.442695
      %v531 = vpow.pop %v530
      %v532 = vsub.f32 1.0, %v405
      %v533 = vsub.f32 1.0, %v407
      %v534 = vsub.f32 1.0, %v409
      %v535 = vsub.f32 1.0, %v411
      %v536 = vsub.f32 1.0, %v413
      %v537 = vsub.f32 1.0, %v415
      %v538 = vsub.f32 1.0, %v417
      %v539 = vsub.f32 1.0, %v419
      %v540 = vsub.f32 1.0, %v421
      %v541 = vsub.f32 1.0, %v423
      %v542 = vsub.f32 1.0, %v425
      %v543 = vsub.f32 1.0, %v427
      %v544 = vsub.f32 1.0, %v429
      %v545 = vsub.f32 1.0, %v431
      %v546 = vsub.f32 1.0, %v433
      %v547 = vsub.f32 1.0, %v435
      %v548 = vsub.f32 1.0, %v437
      %v549 = vsub.f32 1.0, %v439
      %v550 = vsub.f32 1.0, %v441
      %v551 = vsub.f32 1.0, %v443
      %v552 = vsub.f32 1.0, %v445
      %v553 = vsub.f32 1.0, %v447
      %v554 = vsub.f32 1.0, %v449
      %v555 = vsub.f32 1.0, %v451
      %v556 = vsub.f32 1.0, %v453
      %v557 = vsub.f32 1.0, %v455
      %v558 = vsub.f32 1.0, %v457
      %v559 = vsub.f32 1.0, %v459
      %v560 = vsub.f32 1.0, %v461
      %v561 = vsub.f32 1.0, %v463
      %v562 = vsub.f32 1.0, %v465
      %v563 = vsub.f32 1.0, %v467
      %v564 = vsub.f32 1.0, %v469
      %v565 = vsub.f32 1.0, %v471
      %v566 = vsub.f32 1.0, %v473
      %v567 = vsub.f32 1.0, %v475
      %v568 = vsub.f32 1.0, %v477
      %v569 = vsub.f32 1.0, %v479
      %v570 = vsub.f32 1.0, %v481
      %v571 = vsub.f32 1.0, %v483
      %v572 = vsub.f32 1.0, %v485
      %v573 = vsub.f32 1.0, %v487
      %v574 = vsub.f32 1.0, %v489
      %v575 = vsub.f32 1.0, %v491
      %v576 = vsub.f32 1.0, %v493
      %v577 = vsub.f32 1.0, %v495
      %v578 = vsub.f32 1.0, %v497
      %v579 = vsub.f32 1.0, %v499
      %v580 = vsub.f32 1.0, %v501
      %v581 = vsub.f32 1.0, %v503
      %v582 = vsub.f32 1.0, %v505
      %v583 = vsub.f32 1.0, %v507
      %v584 = vsub.f32 1.0, %v509
      %v585 = vsub.f32 1.0, %v511
      %v586 = vsub.f32 1.0, %v513
      %v587 = vsub.f32 1.0, %v515
      %v588 = vsub.f32 1.0, %v517
      %v589 = vsub.f32 1.0, %v519
      %v590 = vsub.f32 1.0, %v521
      %v591 = vsub.f32 1.0, %v523
      %v592 = vsub.f32 1.0, %v525
      %v593 = vsub.f32 1.0, %v527
      %v594 = vsub.f32 1.0, %v529
      %v595 = vsub.f32 1.0, %v531
      %v596 = vld [vmem:[#allocation7] sm:$0xff]
      %v597 = vadd.f32 %v532, %v533
      %v598 = vadd.f32 %v597, %v534
      %v599 = vadd.f32 %v598, %v535
      %v600 = vadd.f32 %v599, %v536
      %v601 = vadd.f32 %v600, %v537
      %v602 = vadd.f32 %v601, %v538
      %v603 = vadd.f32 %v602, %v539
      %v604 = vadd.f32 %v603, %v540
      %v605 = vadd.f32 %v604, %v541
      %v606 = vadd.f32 %v605, %v542
      %v607 = vadd.f32 %v606, %v543
      %v608 = vadd.f32 %v607, %v544
      %v609 = vadd.f32 %v608, %v545
      %v610 = vadd.f32 %v609, %v546
      %v611 = vadd.f32 %v610, %v547
      %v612 = vadd.f32 %v611, %v548
      %v613 = vadd.f32 %v612, %v549
      %v614 = vadd.f32 %v613, %v550
      %v615 = vadd.f32 %v614, %v551
      %v616 = vadd.f32 %v615, %v552
      %v617 = vadd.f32 %v616, %v553
      %v618 = vadd.f32 %v617, %v554
      %v619 = vadd.f32 %v618, %v555
      %v620 = vadd.f32 %v619, %v556
      %v621 = vadd.f32 %v620, %v557
      %v622 = vadd.f32 %v621, %v558
      %v623 = vadd.f32 %v622, %v559
      %v624 = vadd.f32 %v623, %v560
      %v625 = vadd.f32 %v624, %v561
      %v626 = vadd.f32 %v625, %v562
      %v627 = vadd.f32 %v626, %v563
      %v628 = vadd.f32 %v627, %v564
      %v629 = vadd.f32 %v628, %v565
      %v630 = vadd.f32 %v629, %v566
      %v631 = vadd.f32 %v630, %v567
      %v632 = vadd.f32 %v631, %v568
      %v633 = vadd.f32 %v632, %v569
      %v634 = vadd.f32 %v633, %v570
      %v635 = vadd.f32 %v634, %v571
      %v636 = vadd.f32 %v635, %v572
      %v637 = vadd.f32 %v636, %v573
      %v638 = vadd.f32 %v637, %v574
      %v639 = vadd.f32 %v638, %v575
      %v640 = vadd.f32 %v639, %v576
      %v641 = vadd.f32 %v640, %v577
      %v642 = vadd.f32 %v641, %v578
      %v643 = vadd.f32 %v642, %v579
      %v644 = vadd.f32 %v643, %v580
      %v645 = vadd.f32 %v644, %v581
      %v646 = vadd.f32 %v645, %v582
      %v647 = vadd.f32 %v646, %v583
      %v648 = vadd.f32 %v647, %v584
      %v649 = vadd.f32 %v648, %v585
      %v650 = vadd.f32 %v649, %v586
      %v651 = vadd.f32 %v650, %v587
      %v652 = vadd.f32 %v651, %v588
      %v653 = vadd.f32 %v652, %v589
      %v654 = vadd.f32 %v653, %v590
      %v655 = vadd.f32 %v654, %v591
      %v656 = vadd.f32 %v655, %v592
      %v657 = vadd.f32 %v656, %v593
      %v658 = vadd.f32 %v657, %v594
      %v659 = vadd.f32 %v658, %v595
      %v660 = vadd.f32 %v596, %v659
      %661 = vst [vmem:[#allocation7] sm:$0xff] %v660
    $region25: #{tpu_custom_call.1} parent=1 // pred_fallthru
      _
    %p662 = scmp.gt.s32.totalorder %s79, 16
    // Predicated region
    $region26: #{tpu_custom_call.1} parent=1 // pred_check
      %p663 = pneg %p662
    $region27: #{tpu_custom_call.1} parent=1 // pred_check_branch
      %665 = sbr.rel (%p663) target = $region29
    $region28: #{tpu_custom_call.1} parent=1 // pred_region
      %v666 = vld [vmem:[#allocation2] sm:$0xff]
      %v667 = vld [vmem:[#allocation2 + $0x8] sm:$0xff]
      %v668 = vld [vmem:[#allocation2 + $0x10] sm:$0xff]
      %v669 = vld [vmem:[#allocation2 + $0x18] sm:$0xff]
      %v670 = vld [vmem:[#allocation2 + $0x20] sm:$0xff]
      %v671 = vld [vmem:[#allocation2 + $0x28] sm:$0xff]
      %v672 = vld [vmem:[#allocation2 + $0x30] sm:$0xff]
      %v673 = vld [vmem:[#allocation2 + $0x38] sm:$0xff]
      %v674 = vld [vmem:[#allocation2 + $0x40] sm:$0xff]
      %v675 = vld [vmem:[#allocation2 + $0x48] sm:$0xff]
      %v676 = vld [vmem:[#allocation2 + $0x50] sm:$0xff]
      %v677 = vld [vmem:[#allocation2 + $0x58] sm:$0xff]
      %v678 = vld [vmem:[#allocation2 + $0x60] sm:$0xff]
      %v679 = vld [vmem:[#allocation2 + $0x68] sm:$0xff]
      %v680 = vld [vmem:[#allocation2 + $0x70] sm:$0xff]
      %v681 = vld [vmem:[#allocation2 + $0x78] sm:$0xff]
      %v682 = vld [vmem:[#allocation2 + $0x80] sm:$0xff]
      %v683 = vld [vmem:[#allocation2 + $0x88] sm:$0xff]
      %v684 = vld [vmem:[#allocation2 + $0x90] sm:$0xff]
      %v685 = vld [vmem:[#allocation2 + $0x98] sm:$0xff]
      %v686 = vld [vmem:[#allocation2 + $0xa0] sm:$0xff]
      %v687 = vld [vmem:[#allocation2 + $0xa8] sm:$0xff]
      %v688 = vld [vmem:[#allocation2 + $0xb0] sm:$0xff]
      %v689 = vld [vmem:[#allocation2 + $0xb8] sm:$0xff]
      %v690 = vld [vmem:[#allocation2 + $0xc0] sm:$0xff]
      %v691 = vld [vmem:[#allocation2 + $0xc8] sm:$0xff]
      %v692 = vld [vmem:[#allocation2 + $0xd0] sm:$0xff]
      %v693 = vld [vmem:[#allocation2 + $0xd8] sm:$0xff]
      %v694 = vld [vmem:[#allocation2 + $0xe0] sm:$0xff]
      %v695 = vld [vmem:[#allocation2 + $0xe8] sm:$0xff]
      %v696 = vld [vmem:[#allocation2 + $0xf0] sm:$0xff]
      %v697 = vld [vmem:[#allocation2 + $0xf8] sm:$0xff]
      %v698 = vld [vmem:[#allocation2 + $0x100] sm:$0xff]
      %v699 = vld [vmem:[#allocation2 + $0x108] sm:$0xff]
      %v700 = vld [vmem:[#allocation2 + $0x110] sm:$0xff]
      %v701 = vld [vmem:[#allocation2 + $0x118] sm:$0xff]
      %v702 = vld [vmem:[#allocation2 + $0x120] sm:$0xff]
      %v703 = vld [vmem:[#allocation2 + $0x128] sm:$0xff]
      %v704 = vld [vmem:[#allocation2 + $0x130] sm:$0xff]
      %v705 = vld [vmem:[#allocation2 + $0x138] sm:$0xff]
      %v706 = vld [vmem:[#allocation2 + $0x140] sm:$0xff]
      %v707 = vld [vmem:[#allocation2 + $0x148] sm:$0xff]
      %v708 = vld [vmem:[#allocation2 + $0x150] sm:$0xff]
      %v709 = vld [vmem:[#allocation2 + $0x158] sm:$0xff]
      %v710 = vld [vmem:[#allocation2 + $0x160] sm:$0xff]
      %v711 = vld [vmem:[#allocation2 + $0x168] sm:$0xff]
      %v712 = vld [vmem:[#allocation2 + $0x170] sm:$0xff]
      %v713 = vld [vmem:[#allocation2 + $0x178] sm:$0xff]
      %v714 = vld [vmem:[#allocation2 + $0x180] sm:$0xff]
      %v715 = vld [vmem:[#allocation2 + $0x188] sm:$0xff]
      %v716 = vld [vmem:[#allocation2 + $0x190] sm:$0xff]
      %v717 = vld [vmem:[#allocation2 + $0x198] sm:$0xff]
      %v718 = vld [vmem:[#allocation2 + $0x1a0] sm:$0xff]
      %v719 = vld [vmem:[#allocation2 + $0x1a8] sm:$0xff]
      %v720 = vld [vmem:[#allocation2 + $0x1b0] sm:$0xff]
      %v721 = vld [vmem:[#allocation2 + $0x1b8] sm:$0xff]
      %v722 = vld [vmem:[#allocation2 + $0x1c0] sm:$0xff]
      %v723 = vld [vmem:[#allocation2 + $0x1c8] sm:$0xff]
      %v724 = vld [vmem:[#allocation2 + $0x1d0] sm:$0xff]
      %v725 = vld [vmem:[#allocation2 + $0x1d8] sm:$0xff]
      %v726 = vld [vmem:[#allocation2 + $0x1e0] sm:$0xff]
      %v727 = vld [vmem:[#allocation2 + $0x1e8] sm:$0xff]
      %v728 = vld [vmem:[#allocation2 + $0x1f0] sm:$0xff]
      %v729 = vld [vmem:[#allocation2 + $0x1f8] sm:$0xff]
      %v730 = vld [vmem:[#allocation5] sm:$0xff]
      %v731 = vld [vmem:[#allocation5 + $0x8] sm:$0xff]
      %v732 = vld [vmem:[#allocation5 + $0x10] sm:$0xff]
      %v733 = vld [vmem:[#allocation5 + $0x18] sm:$0xff]
      %v734 = vld [vmem:[#allocation5 + $0x20] sm:$0xff]
      %v735 = vld [vmem:[#allocation5 + $0x28] sm:$0xff]
      %v736 = vld [vmem:[#allocation5 + $0x30] sm:$0xff]
      %v737 = vld [vmem:[#allocation5 + $0x38] sm:$0xff]
      %v738 = vld [vmem:[#allocation5 + $0x40] sm:$0xff]
      %v739 = vld [vmem:[#allocation5 + $0x48] sm:$0xff]
      %v740 = vld [vmem:[#allocation5 + $0x50] sm:$0xff]
      %v741 = vld [vmem:[#allocation5 + $0x58] sm:$0xff]
      %v742 = vld [vmem:[#allocation5 + $0x60] sm:$0xff]
      %v743 = vld [vmem:[#allocation5 + $0x68] sm:$0xff]
      %v744 = vld [vmem:[#allocation5 + $0x70] sm:$0xff]
      %v745 = vld [vmem:[#allocation5 + $0x78] sm:$0xff]
      %v746 = vld [vmem:[#allocation5 + $0x80] sm:$0xff]
      %v747 = vld [vmem:[#allocation5 + $0x88] sm:$0xff]
      %v748 = vld [vmem:[#allocation5 + $0x90] sm:$0xff]
      %v749 = vld [vmem:[#allocation5 + $0x98] sm:$0xff]
      %v750 = vld [vmem:[#allocation5 + $0xa0] sm:$0xff]
      %v751 = vld [vmem:[#allocation5 + $0xa8] sm:$0xff]
      %v752 = vld [vmem:[#allocation5 + $0xb0] sm:$0xff]
      %v753 = vld [vmem:[#allocation5 + $0xb8] sm:$0xff]
      %v754 = vld [vmem:[#allocation5 + $0xc0] sm:$0xff]
      %v755 = vld [vmem:[#allocation5 + $0xc8] sm:$0xff]
      %v756 = vld [vmem:[#allocation5 + $0xd0] sm:$0xff]
      %v757 = vld [vmem:[#allocation5 + $0xd8] sm:$0xff]
      %v758 = vld [vmem:[#allocation5 + $0xe0] sm:$0xff]
      %v759 = vld [vmem:[#allocation5 + $0xe8] sm:$0xff]
      %v760 = vld [vmem:[#allocation5 + $0xf0] sm:$0xff]
      %v761 = vld [vmem:[#allocation5 + $0xf8] sm:$0xff]
      %v762 = vld [vmem:[#allocation5 + $0x100] sm:$0xff]
      %v763 = vld [vmem:[#allocation5 + $0x108] sm:$0xff]
      %v764 = vld [vmem:[#allocation5 + $0x110] sm:$0xff]
      %v765 = vld [vmem:[#allocation5 + $0x118] sm:$0xff]
      %v766 = vld [vmem:[#allocation5 + $0x120] sm:$0xff]
      %v767 = vld [vmem:[#allocation5 + $0x128] sm:$0xff]
      %v768 = vld [vmem:[#allocation5 + $0x130] sm:$0xff]
      %v769 = vld [vmem:[#allocation5 + $0x138] sm:$0xff]
      %v770 = vld [vmem:[#allocation5 + $0x140] sm:$0xff]
      %v771 = vld [vmem:[#allocation5 + $0x148] sm:$0xff]
      %v772 = vld [vmem:[#allocation5 + $0x150] sm:$0xff]
      %v773 = vld [vmem:[#allocation5 + $0x158] sm:$0xff]
      %v774 = vld [vmem:[#allocation5 + $0x160] sm:$0xff]
      %v775 = vld [vmem:[#allocation5 + $0x168] sm:$0xff]
      %v776 = vld [vmem:[#allocation5 + $0x170] sm:$0xff]
      %v777 = vld [vmem:[#allocation5 + $0x178] sm:$0xff]
      %v778 = vld [vmem:[#allocation5 + $0x180] sm:$0xff]
      %v779 = vld [vmem:[#allocation5 + $0x188] sm:$0xff]
      %v780 = vld [vmem:[#allocation5 + $0x190] sm:$0xff]
      %v781 = vld [vmem:[#allocation5 + $0x198] sm:$0xff]
      %v782 = vld [vmem:[#allocation5 + $0x1a0] sm:$0xff]
      %v783 = vld [vmem:[#allocation5 + $0x1a8] sm:$0xff]
      %v784 = vld [vmem:[#allocation5 + $0x1b0] sm:$0xff]
      %v785 = vld [vmem:[#allocation5 + $0x1b8] sm:$0xff]
      %v786 = vld [vmem:[#allocation5 + $0x1c0] sm:$0xff]
      %v787 = vld [vmem:[#allocation5 + $0x1c8] sm:$0xff]
      %v788 = vld [vmem:[#allocation5 + $0x1d0] sm:$0xff]
      %v789 = vld [vmem:[#allocation5 + $0x1d8] sm:$0xff]
      %v790 = vld [vmem:[#allocation5 + $0x1e0] sm:$0xff]
      %v791 = vld [vmem:[#allocation5 + $0x1e8] sm:$0xff]
      %v792 = vld [vmem:[#allocation5 + $0x1f0] sm:$0xff]
      %v793 = vld [vmem:[#allocation5 + $0x1f8] sm:$0xff]
      %v794 = vsub.f32 %v730, %v666
      %v795 = vsub.f32 %v731, %v667
      %v796 = vsub.f32 %v732, %v668
      %v797 = vsub.f32 %v733, %v669
      %v798 = vsub.f32 %v734, %v670
      %v799 = vsub.f32 %v735, %v671
      %v800 = vsub.f32 %v736, %v672
      %v801 = vsub.f32 %v737, %v673
      %v802 = vsub.f32 %v738, %v674
      %v803 = vsub.f32 %v739, %v675
      %v804 = vsub.f32 %v740, %v676
      %v805 = vsub.f32 %v741, %v677
      %v806 = vsub.f32 %v742, %v678
      %v807 = vsub.f32 %v743, %v679
      %v808 = vsub.f32 %v744, %v680
      %v809 = vsub.f32 %v745, %v681
      %v810 = vsub.f32 %v746, %v682
      %v811 = vsub.f32 %v747, %v683
      %v812 = vsub.f32 %v748, %v684
      %v813 = vsub.f32 %v749, %v685
      %v814 = vsub.f32 %v750, %v686
      %v815 = vsub.f32 %v751, %v687
      %v816 = vsub.f32 %v752, %v688
      %v817 = vsub.f32 %v753, %v689
      %v818 = vsub.f32 %v754, %v690
      %v819 = vsub.f32 %v755, %v691
      %v820 = vsub.f32 %v756, %v692
      %v821 = vsub.f32 %v757, %v693
      %v822 = vsub.f32 %v758, %v694
      %v823 = vsub.f32 %v759, %v695
      %v824 = vsub.f32 %v760, %v696
      %v825 = vsub.f32 %v761, %v697
      %v826 = vsub.f32 %v762, %v698
      %v827 = vsub.f32 %v763, %v699
      %v828 = vsub.f32 %v764, %v700
      %v829 = vsub.f32 %v765, %v701
      %v830 = vsub.f32 %v766, %v702
      %v831 = vsub.f32 %v767, %v703
      %v832 = vsub.f32 %v768, %v704
      %v833 = vsub.f32 %v769, %v705
      %v834 = vsub.f32 %v770, %v706
      %v835 = vsub.f32 %v771, %v707
      %v836 = vsub.f32 %v772, %v708
      %v837 = vsub.f32 %v773, %v709
      %v838 = vsub.f32 %v774, %v710
      %v839 = vsub.f32 %v775, %v711
      %v840 = vsub.f32 %v776, %v712
      %v841 = vsub.f32 %v777, %v713
      %v842 = vsub.f32 %v778, %v714
      %v843 = vsub.f32 %v779, %v715
      %v844 = vsub.f32 %v780, %v716
      %v845 = vsub.f32 %v781, %v717
      %v846 = vsub.f32 %v782, %v718
      %v847 = vsub.f32 %v783, %v719
      %v848 = vsub.f32 %v784, %v720
      %v849 = vsub.f32 %v785, %v721
      %v850 = vsub.f32 %v786, %v722
      %v851 = vsub.f32 %v787, %v723
      %v852 = vsub.f32 %v788, %v724
      %v853 = vsub.f32 %v789, %v725
      %v854 = vsub.f32 %v790, %v726
      %v855 = vsub.f32 %v791, %v727
      %v856 = vsub.f32 %v792, %v728
      %v857 = vsub.f32 %v793, %v729
      %s858 = sadd.s32 %s78, 0
      %v859 = vlaneseq
      %v860 = vshrl.u32 %v859, 7
      %v861 = vadd.s32 %v860, 8
      %v862 = vadd.s32 %v860, 16
      %v863 = vadd.s32 %v860, 24
      %v864 = vadd.s32 %v860, 32
      %v865 = vadd.s32 %v860, 40
      %v866 = vadd.s32 %v860, 48
      %v867 = vadd.s32 %v860, 56
      %v868 = vadd.s32 %v860, 64
      %v869 = vadd.s32 %v860, 72
      %v870 = vadd.s32 %v860, 80
      %v871 = vadd.s32 %v860, 88
      %v872 = vadd.s32 %v860, 96
      %v873 = vadd.s32 %v860, 104
      %v874 = vadd.s32 %v860, 112
      %v875 = vadd.s32 %v860, 120
      %v876 = vadd.s32 %v860, 128
      %v877 = vadd.s32 %v860, 136
      %v878 = vadd.s32 %v860, 144
      %v879 = vadd.s32 %v860, 152
      %v880 = vadd.s32 %v860, 160
      %v881 = vadd.s32 %v860, 168
      %v882 = vadd.s32 %v860, 176
      %v883 = vadd.s32 %v860, 184
      %v884 = vadd.s32 %v860, 192
      %v885 = vadd.s32 %v860, 200
      %v886 = vadd.s32 %v860, 208
      %v887 = vadd.s32 %v860, 216
      %v888 = vadd.s32 %v860, 224
      %v889 = vadd.s32 %v860, 232
      %v890 = vadd.s32 %v860, 240
      %v891 = vadd.s32 %v860, 248
      %v892 = vadd.s32 %v860, 256
      %v893 = vadd.s32 %v860, 264
      %v894 = vadd.s32 %v860, 272
      %v895 = vadd.s32 %v860, 280
      %v896 = vadd.s32 %v860, 288
      %v897 = vadd.s32 %v860, 296
      %v898 = vadd.s32 %v860, 304
      %v899 = vadd.s32 %v860, 312
      %v900 = vadd.s32 %v860, 320
      %v901 = vadd.s32 %v860, 328
      %v902 = vadd.s32 %v860, 336
      %v903 = vadd.s32 %v860, 344
      %v904 = vadd.s32 %v860, 352
      %v905 = vadd.s32 %v860, 360
      %v906 = vadd.s32 %v860, 368
      %v907 = vadd.s32 %v860, 376
      %v908 = vadd.s32 %v860, 384
      %v909 = vadd.s32 %v860, 392
      %v910 = vadd.s32 %v860, 400
      %v911 = vadd.s32 %v860, 408
      %v912 = vadd.s32 %v860, 416
      %v913 = vadd.s32 %v860, 424
      %v914 = vadd.s32 %v860, 432
      %v915 = vadd.s32 %v860, 440
      %v916 = vadd.s32 %v860, 448
      %v917 = vadd.s32 %v860, 456
      %v918 = vadd.s32 %v860, 464
      %v919 = vadd.s32 %v860, 472
      %v920 = vadd.s32 %v860, 480
      %v921 = vadd.s32 %v860, 488
      %v922 = vadd.s32 %v860, 496
      %v923 = vadd.s32 %v860, 504
      %v924 = vstv %s858
      %v925 = vadd.s32 %v924, %v860
      %v926 = vadd.s32 %v924, %v861
      %v927 = vadd.s32 %v924, %v862
      %v928 = vadd.s32 %v924, %v863
      %v929 = vadd.s32 %v924, %v864
      %v930 = vadd.s32 %v924, %v865
      %v931 = vadd.s32 %v924, %v866
      %v932 = vadd.s32 %v924, %v867
      %v933 = vadd.s32 %v924, %v868
      %v934 = vadd.s32 %v924, %v869
      %v935 = vadd.s32 %v924, %v870
      %v936 = vadd.s32 %v924, %v871
      %v937 = vadd.s32 %v924, %v872
      %v938 = vadd.s32 %v924, %v873
      %v939 = vadd.s32 %v924, %v874
      %v940 = vadd.s32 %v924, %v875
      %v941 = vadd.s32 %v924, %v876
      %v942 = vadd.s32 %v924, %v877
      %v943 = vadd.s32 %v924, %v878
      %v944 = vadd.s32 %v924, %v879
      %v945 = vadd.s32 %v924, %v880
      %v946 = vadd.s32 %v924, %v881
      %v947 = vadd.s32 %v924, %v882
      %v948 = vadd.s32 %v924, %v883
      %v949 = vadd.s32 %v924, %v884
      %v950 = vadd.s32 %v924, %v885
      %v951 = vadd.s32 %v924, %v886
      %v952 = vadd.s32 %v924, %v887
      %v953 = vadd.s32 %v924, %v888
      %v954 = vadd.s32 %v924, %v889
      %v955 = vadd.s32 %v924, %v890
      %v956 = vadd.s32 %v924, %v891
      %v957 = vadd.s32 %v924, %v892
      %v958 = vadd.s32 %v924, %v893
      %v959 = vadd.s32 %v924, %v894
      %v960 = vadd.s32 %v924, %v895
      %v961 = vadd.s32 %v924, %v896
      %v962 = vadd.s32 %v924, %v897
      %v963 = vadd.s32 %v924, %v898
      %v964 = vadd.s32 %v924, %v899
      %v965 = vadd.s32 %v924, %v900
      %v966 = vadd.s32 %v924, %v901
      %v967 = vadd.s32 %v924, %v902
      %v968 = vadd.s32 %v924, %v903
      %v969 = vadd.s32 %v924, %v904
      %v970 = vadd.s32 %v924, %v905
      %v971 = vadd.s32 %v924, %v906
      %v972 = vadd.s32 %v924, %v907
      %v973 = vadd.s32 %v924, %v908
      %v974 = vadd.s32 %v924, %v909
      %v975 = vadd.s32 %v924, %v910
      %v976 = vadd.s32 %v924, %v911
      %v977 = vadd.s32 %v924, %v912
      %v978 = vadd.s32 %v924, %v913
      %v979 = vadd.s32 %v924, %v914
      %v980 = vadd.s32 %v924, %v915
      %v981 = vadd.s32 %v924, %v916
      %v982 = vadd.s32 %v924, %v917
      %v983 = vadd.s32 %v924, %v918
      %v984 = vadd.s32 %v924, %v919
      %v985 = vadd.s32 %v924, %v920
      %v986 = vadd.s32 %v924, %v921
      %v987 = vadd.s32 %v924, %v922
      %v988 = vadd.s32 %v924, %v923
      %vm989 = vcmp.lt.s32.totalorder %v925, 16
      %vm990 = vcmp.lt.s32.totalorder %v926, 16
      %vm991 = vcmp.lt.s32.totalorder %v927, 16
      %vm992 = vcmp.lt.s32.totalorder %v928, 16
      %vm993 = vcmp.lt.s32.totalorder %v929, 16
      %vm994 = vcmp.lt.s32.totalorder %v930, 16
      %vm995 = vcmp.lt.s32.totalorder %v931, 16
      %vm996 = vcmp.lt.s32.totalorder %v932, 16
      %vm997 = vcmp.lt.s32.totalorder %v933, 16
      %vm998 = vcmp.lt.s32.totalorder %v934, 16
      %vm999 = vcmp.lt.s32.totalorder %v935, 16
      %vm1000 = vcmp.lt.s32.totalorder %v936, 16
      %vm1001 = vcmp.lt.s32.totalorder %v937, 16
      %vm1002 = vcmp.lt.s32.totalorder %v938, 16
      %vm1003 = vcmp.lt.s32.totalorder %v939, 16
      %vm1004 = vcmp.lt.s32.totalorder %v940, 16
      %vm1005 = vcmp.lt.s32.totalorder %v941, 16
      %vm1006 = vcmp.lt.s32.totalorder %v942, 16
      %vm1007 = vcmp.lt.s32.totalorder %v943, 16
      %vm1008 = vcmp.lt.s32.totalorder %v944, 16
      %vm1009 = vcmp.lt.s32.totalorder %v945, 16
      %vm1010 = vcmp.lt.s32.totalorder %v946, 16
      %vm1011 = vcmp.lt.s32.totalorder %v947, 16
      %vm1012 = vcmp.lt.s32.totalorder %v948, 16
      %vm1013 = vcmp.lt.s32.totalorder %v949, 16
      %vm1014 = vcmp.lt.s32.totalorder %v950, 16
      %vm1015 = vcmp.lt.s32.totalorder %v951, 16
      %vm1016 = vcmp.lt.s32.totalorder %v952, 16
      %vm1017 = vcmp.lt.s32.totalorder %v953, 16
      %vm1018 = vcmp.lt.s32.totalorder %v954, 16
      %vm1019 = vcmp.lt.s32.totalorder %v955, 16
      %vm1020 = vcmp.lt.s32.totalorder %v956, 16
      %vm1021 = vcmp.lt.s32.totalorder %v957, 16
      %vm1022 = vcmp.lt.s32.totalorder %v958, 16
      %vm1023 = vcmp.lt.s32.totalorder %v959, 16
      %vm1024 = vcmp.lt.s32.totalorder %v960, 16
      %vm1025 = vcmp.lt.s32.totalorder %v961, 16
      %vm1026 = vcmp.lt.s32.totalorder %v962, 16
      %vm1027 = vcmp.lt.s32.totalorder %v963, 16
      %vm1028 = vcmp.lt.s32.totalorder %v964, 16
      %vm1029 = vcmp.lt.s32.totalorder %v965, 16
      %vm1030 = vcmp.lt.s32.totalorder %v966, 16
      %vm1031 = vcmp.lt.s32.totalorder %v967, 16
      %vm1032 = vcmp.lt.s32.totalorder %v968, 16
      %vm1033 = vcmp.lt.s32.totalorder %v969, 16
      %vm1034 = vcmp.lt.s32.totalorder %v970, 16
      %vm1035 = vcmp.lt.s32.totalorder %v971, 16
      %vm1036 = vcmp.lt.s32.totalorder %v972, 16
      %vm1037 = vcmp.lt.s32.totalorder %v973, 16
      %vm1038 = vcmp.lt.s32.totalorder %v974, 16
      %vm1039 = vcmp.lt.s32.totalorder %v975, 16
      %vm1040 = vcmp.lt.s32.totalorder %v976, 16
      %vm1041 = vcmp.lt.s32.totalorder %v977, 16
      %vm1042 = vcmp.lt.s32.totalorder %v978, 16
      %vm1043 = vcmp.lt.s32.totalorder %v979, 16
      %vm1044 = vcmp.lt.s32.totalorder %v980, 16
      %vm1045 = vcmp.lt.s32.totalorder %v981, 16
      %vm1046 = vcmp.lt.s32.totalorder %v982, 16
      %vm1047 = vcmp.lt.s32.totalorder %v983, 16
      %vm1048 = vcmp.lt.s32.totalorder %v984, 16
      %vm1049 = vcmp.lt.s32.totalorder %v985, 16
      %vm1050 = vcmp.lt.s32.totalorder %v986, 16
      %vm1051 = vcmp.lt.s32.totalorder %v987, 16
      %vm1052 = vcmp.lt.s32.totalorder %v988, 16
      %v1053 = vsel %vm989, 1, 0
      %v1054 = vsel %vm990, 1, 0
      %v1055 = vsel %vm991, 1, 0
      %v1056 = vsel %vm992, 1, 0
      %v1057 = vsel %vm993, 1, 0
      %v1058 = vsel %vm994, 1, 0
      %v1059 = vsel %vm995, 1, 0
      %v1060 = vsel %vm996, 1, 0
      %v1061 = vsel %vm997, 1, 0
      %v1062 = vsel %vm998, 1, 0
      %v1063 = vsel %vm999, 1, 0
      %v1064 = vsel %vm1000, 1, 0
      %v1065 = vsel %vm1001, 1, 0
      %v1066 = vsel %vm1002, 1, 0
      %v1067 = vsel %vm1003, 1, 0
      %v1068 = vsel %vm1004, 1, 0
      %v1069 = vsel %vm1005, 1, 0
      %v1070 = vsel %vm1006, 1, 0
      %v1071 = vsel %vm1007, 1, 0
      %v1072 = vsel %vm1008, 1, 0
      %v1073 = vsel %vm1009, 1, 0
      %v1074 = vsel %vm1010, 1, 0
      %v1075 = vsel %vm1011, 1, 0
      %v1076 = vsel %vm1012, 1, 0
      %v1077 = vsel %vm1013, 1, 0
      %v1078 = vsel %vm1014, 1, 0
      %v1079 = vsel %vm1015, 1, 0
      %v1080 = vsel %vm1016, 1, 0
      %v1081 = vsel %vm1017, 1, 0
      %v1082 = vsel %vm1018, 1, 0
      %v1083 = vsel %vm1019, 1, 0
      %v1084 = vsel %vm1020, 1, 0
      %v1085 = vsel %vm1021, 1, 0
      %v1086 = vsel %vm1022, 1, 0
      %v1087 = vsel %vm1023, 1, 0
      %v1088 = vsel %vm1024, 1, 0
      %v1089 = vsel %vm1025, 1, 0
      %v1090 = vsel %vm1026, 1, 0
      %v1091 = vsel %vm1027, 1, 0
      %v1092 = vsel %vm1028, 1, 0
      %v1093 = vsel %vm1029, 1, 0
      %v1094 = vsel %vm1030, 1, 0
      %v1095 = vsel %vm1031, 1, 0
      %v1096 = vsel %vm1032, 1, 0
      %v1097 = vsel %vm1033, 1, 0
      %v1098 = vsel %vm1034, 1, 0
      %v1099 = vsel %vm1035, 1, 0
      %v1100 = vsel %vm1036, 1, 0
      %v1101 = vsel %vm1037, 1, 0
      %v1102 = vsel %vm1038, 1, 0
      %v1103 = vsel %vm1039, 1, 0
      %v1104 = vsel %vm1040, 1, 0
      %v1105 = vsel %vm1041, 1, 0
      %v1106 = vsel %vm1042, 1, 0
      %v1107 = vsel %vm1043, 1, 0
      %v1108 = vsel %vm1044, 1, 0
      %v1109 = vsel %vm1045, 1, 0
      %v1110 = vsel %vm1046, 1, 0
      %v1111 = vsel %vm1047, 1, 0
      %v1112 = vsel %vm1048, 1, 0
      %v1113 = vsel %vm1049, 1, 0
      %v1114 = vsel %vm1050, 1, 0
      %v1115 = vsel %vm1051, 1, 0
      %v1116 = vsel %vm1052, 1, 0
      %vm1117 = vcmp.eq.s32.totalorder %v1053, 1
      %vm1118 = vcmp.eq.s32.totalorder %v1054, 1
      %vm1119 = vcmp.eq.s32.totalorder %v1055, 1
      %vm1120 = vcmp.eq.s32.totalorder %v1056, 1
      %vm1121 = vcmp.eq.s32.totalorder %v1057, 1
      %vm1122 = vcmp.eq.s32.totalorder %v1058, 1
      %vm1123 = vcmp.eq.s32.totalorder %v1059, 1
      %vm1124 = vcmp.eq.s32.totalorder %v1060, 1
      %vm1125 = vcmp.eq.s32.totalorder %v1061, 1
      %vm1126 = vcmp.eq.s32.totalorder %v1062, 1
      %vm1127 = vcmp.eq.s32.totalorder %v1063, 1
      %vm1128 = vcmp.eq.s32.totalorder %v1064, 1
      %vm1129 = vcmp.eq.s32.totalorder %v1065, 1
      %vm1130 = vcmp.eq.s32.totalorder %v1066, 1
      %vm1131 = vcmp.eq.s32.totalorder %v1067, 1
      %vm1132 = vcmp.eq.s32.totalorder %v1068, 1
      %vm1133 = vcmp.eq.s32.totalorder %v1069, 1
      %vm1134 = vcmp.eq.s32.totalorder %v1070, 1
      %vm1135 = vcmp.eq.s32.totalorder %v1071, 1
      %vm1136 = vcmp.eq.s32.totalorder %v1072, 1
      %vm1137 = vcmp.eq.s32.totalorder %v1073, 1
      %vm1138 = vcmp.eq.s32.totalorder %v1074, 1
      %vm1139 = vcmp.eq.s32.totalorder %v1075, 1
      %vm1140 = vcmp.eq.s32.totalorder %v1076, 1
      %vm1141 = vcmp.eq.s32.totalorder %v1077, 1
      %vm1142 = vcmp.eq.s32.totalorder %v1078, 1
      %vm1143 = vcmp.eq.s32.totalorder %v1079, 1
      %vm1144 = vcmp.eq.s32.totalorder %v1080, 1
      %vm1145 = vcmp.eq.s32.totalorder %v1081, 1
      %vm1146 = vcmp.eq.s32.totalorder %v1082, 1
      %vm1147 = vcmp.eq.s32.totalorder %v1083, 1
      %vm1148 = vcmp.eq.s32.totalorder %v1084, 1
      %vm1149 = vcmp.eq.s32.totalorder %v1085, 1
      %vm1150 = vcmp.eq.s32.totalorder %v1086, 1
      %vm1151 = vcmp.eq.s32.totalorder %v1087, 1
      %vm1152 = vcmp.eq.s32.totalorder %v1088, 1
      %vm1153 = vcmp.eq.s32.totalorder %v1089, 1
      %vm1154 = vcmp.eq.s32.totalorder %v1090, 1
      %vm1155 = vcmp.eq.s32.totalorder %v1091, 1
      %vm1156 = vcmp.eq.s32.totalorder %v1092, 1
      %vm1157 = vcmp.eq.s32.totalorder %v1093, 1
      %vm1158 = vcmp.eq.s32.totalorder %v1094, 1
      %vm1159 = vcmp.eq.s32.totalorder %v1095, 1
      %vm1160 = vcmp.eq.s32.totalorder %v1096, 1
      %vm1161 = vcmp.eq.s32.totalorder %v1097, 1
      %vm1162 = vcmp.eq.s32.totalorder %v1098, 1
      %vm1163 = vcmp.eq.s32.totalorder %v1099, 1
      %vm1164 = vcmp.eq.s32.totalorder %v1100, 1
      %vm1165 = vcmp.eq.s32.totalorder %v1101, 1
      %vm1166 = vcmp.eq.s32.totalorder %v1102, 1
      %vm1167 = vcmp.eq.s32.totalorder %v1103, 1
      %vm1168 = vcmp.eq.s32.totalorder %v1104, 1
      %vm1169 = vcmp.eq.s32.totalorder %v1105, 1
      %vm1170 = vcmp.eq.s32.totalorder %v1106, 1
      %vm1171 = vcmp.eq.s32.totalorder %v1107, 1
      %vm1172 = vcmp.eq.s32.totalorder %v1108, 1
      %vm1173 = vcmp.eq.s32.totalorder %v1109, 1
      %vm1174 = vcmp.eq.s32.totalorder %v1110, 1
      %vm1175 = vcmp.eq.s32.totalorder %v1111, 1
      %vm1176 = vcmp.eq.s32.totalorder %v1112, 1
      %vm1177 = vcmp.eq.s32.totalorder %v1113, 1
      %vm1178 = vcmp.eq.s32.totalorder %v1114, 1
      %vm1179 = vcmp.eq.s32.totalorder %v1115, 1
      %vm1180 = vcmp.eq.s32.totalorder %v1116, 1
      %v1181 = vsel %vm1117, %v794, 0.0
      %v1182 = vsel %vm1118, %v795, 0.0
      %v1183 = vsel %vm1119, %v796, 0.0
      %v1184 = vsel %vm1120, %v797, 0.0
      %v1185 = vsel %vm1121, %v798, 0.0
      %v1186 = vsel %vm1122, %v799, 0.0
      %v1187 = vsel %vm1123, %v800, 0.0
      %v1188 = vsel %vm1124, %v801, 0.0
      %v1189 = vsel %vm1125, %v802, 0.0
      %v1190 = vsel %vm1126, %v803, 0.0
      %v1191 = vsel %vm1127, %v804, 0.0
      %v1192 = vsel %vm1128, %v805, 0.0
      %v1193 = vsel %vm1129, %v806, 0.0
      %v1194 = vsel %vm1130, %v807, 0.0
      %v1195 = vsel %vm1131, %v808, 0.0
      %v1196 = vsel %vm1132, %v809, 0.0
      %v1197 = vsel %vm1133, %v810, 0.0
      %v1198 = vsel %vm1134, %v811, 0.0
      %v1199 = vsel %vm1135, %v812, 0.0
      %v1200 = vsel %vm1136, %v813, 0.0
      %v1201 = vsel %vm1137, %v814, 0.0
      %v1202 = vsel %vm1138, %v815, 0.0
      %v1203 = vsel %vm1139, %v816, 0.0
      %v1204 = vsel %vm1140, %v817, 0.0
      %v1205 = vsel %vm1141, %v818, 0.0
      %v1206 = vsel %vm1142, %v819, 0.0
      %v1207 = vsel %vm1143, %v820, 0.0
      %v1208 = vsel %vm1144, %v821, 0.0
      %v1209 = vsel %vm1145, %v822, 0.0
      %v1210 = vsel %vm1146, %v823, 0.0
      %v1211 = vsel %vm1147, %v824, 0.0
      %v1212 = vsel %vm1148, %v825, 0.0
      %v1213 = vsel %vm1149, %v826, 0.0
      %v1214 = vsel %vm1150, %v827, 0.0
      %v1215 = vsel %vm1151, %v828, 0.0
      %v1216 = vsel %vm1152, %v829, 0.0
      %v1217 = vsel %vm1153, %v830, 0.0
      %v1218 = vsel %vm1154, %v831, 0.0
      %v1219 = vsel %vm1155, %v832, 0.0
      %v1220 = vsel %vm1156, %v833, 0.0
      %v1221 = vsel %vm1157, %v834, 0.0
      %v1222 = vsel %vm1158, %v835, 0.0
      %v1223 = vsel %vm1159, %v836, 0.0
      %v1224 = vsel %vm1160, %v837, 0.0
      %v1225 = vsel %vm1161, %v838, 0.0
      %v1226 = vsel %vm1162, %v839, 0.0
      %v1227 = vsel %vm1163, %v840, 0.0
      %v1228 = vsel %vm1164, %v841, 0.0
      %v1229 = vsel %vm1165, %v842, 0.0
      %v1230 = vsel %vm1166, %v843, 0.0
      %v1231 = vsel %vm1167, %v844, 0.0
      %v1232 = vsel %vm1168, %v845, 0.0
      %v1233 = vsel %vm1169, %v846, 0.0
      %v1234 = vsel %vm1170, %v847, 0.0
      %v1235 = vsel %vm1171, %v848, 0.0
      %v1236 = vsel %vm1172, %v849, 0.0
      %v1237 = vsel %vm1173, %v850, 0.0
      %v1238 = vsel %vm1174, %v851, 0.0
      %v1239 = vsel %vm1175, %v852, 0.0
      %v1240 = vsel %vm1176, %v853, 0.0
      %v1241 = vsel %vm1177, %v854, 0.0
      %v1242 = vsel %vm1178, %v855, 0.0
      %v1243 = vsel %vm1179, %v856, 0.0
      %v1244 = vsel %vm1180, %v857, 0.0
      %v1245 = vmul.f32 %v1181, %v1181
      %v1246 = vmul.f32 %v1182, %v1182
      %v1247 = vmul.f32 %v1183, %v1183
      %v1248 = vmul.f32 %v1184, %v1184
      %v1249 = vmul.f32 %v1185, %v1185
      %v1250 = vmul.f32 %v1186, %v1186
      %v1251 = vmul.f32 %v1187, %v1187
      %v1252 = vmul.f32 %v1188, %v1188
      %v1253 = vmul.f32 %v1189, %v1189
      %v1254 = vmul.f32 %v1190, %v1190
      %v1255 = vmul.f32 %v1191, %v1191
      %v1256 = vmul.f32 %v1192, %v1192
      %v1257 = vmul.f32 %v1193, %v1193
      %v1258 = vmul.f32 %v1194, %v1194
      %v1259 = vmul.f32 %v1195, %v1195
      %v1260 = vmul.f32 %v1196, %v1196
      %v1261 = vmul.f32 %v1197, %v1197
      %v1262 = vmul.f32 %v1198, %v1198
      %v1263 = vmul.f32 %v1199, %v1199
      %v1264 = vmul.f32 %v1200, %v1200
      %v1265 = vmul.f32 %v1201, %v1201
      %v1266 = vmul.f32 %v1202, %v1202
      %v1267 = vmul.f32 %v1203, %v1203
      %v1268 = vmul.f32 %v1204, %v1204
      %v1269 = vmul.f32 %v1205, %v1205
      %v1270 = vmul.f32 %v1206, %v1206
      %v1271 = vmul.f32 %v1207, %v1207
      %v1272 = vmul.f32 %v1208, %v1208
      %v1273 = vmul.f32 %v1209, %v1209
      %v1274 = vmul.f32 %v1210, %v1210
      %v1275 = vmul.f32 %v1211, %v1211
      %v1276 = vmul.f32 %v1212, %v1212
      %v1277 = vmul.f32 %v1213, %v1213
      %v1278 = vmul.f32 %v1214, %v1214
      %v1279 = vmul.f32 %v1215, %v1215
      %v1280 = vmul.f32 %v1216, %v1216
      %v1281 = vmul.f32 %v1217, %v1217
      %v1282 = vmul.f32 %v1218, %v1218
      %v1283 = vmul.f32 %v1219, %v1219
      %v1284 = vmul.f32 %v1220, %v1220
      %v1285 = vmul.f32 %v1221, %v1221
      %v1286 = vmul.f32 %v1222, %v1222
      %v1287 = vmul.f32 %v1223, %v1223
      %v1288 = vmul.f32 %v1224, %v1224
      %v1289 = vmul.f32 %v1225, %v1225
      %v1290 = vmul.f32 %v1226, %v1226
      %v1291 = vmul.f32 %v1227, %v1227
      %v1292 = vmul.f32 %v1228, %v1228
      %v1293 = vmul.f32 %v1229, %v1229
      %v1294 = vmul.f32 %v1230, %v1230
      %v1295 = vmul.f32 %v1231, %v1231
      %v1296 = vmul.f32 %v1232, %v1232
      %v1297 = vmul.f32 %v1233, %v1233
      %v1298 = vmul.f32 %v1234, %v1234
      %v1299 = vmul.f32 %v1235, %v1235
      %v1300 = vmul.f32 %v1236, %v1236
      %v1301 = vmul.f32 %v1237, %v1237
      %v1302 = vmul.f32 %v1238, %v1238
      %v1303 = vmul.f32 %v1239, %v1239
      %v1304 = vmul.f32 %v1240, %v1240
      %v1305 = vmul.f32 %v1241, %v1241
      %v1306 = vmul.f32 %v1242, %v1242
      %v1307 = vmul.f32 %v1243, %v1243
      %v1308 = vmul.f32 %v1244, %v1244
      %v1309 = vmul.f32 %v1245, -0.015625
      %v1310 = vmul.f32 %v1246, -0.015625
      %v1311 = vmul.f32 %v1247, -0.015625
      %v1312 = vmul.f32 %v1248, -0.015625
      %v1313 = vmul.f32 %v1249, -0.015625
      %v1314 = vmul.f32 %v1250, -0.015625
      %v1315 = vmul.f32 %v1251, -0.015625
      %v1316 = vmul.f32 %v1252, -0.015625
      %v1317 = vmul.f32 %v1253, -0.015625
      %v1318 = vmul.f32 %v1254, -0.015625
      %v1319 = vmul.f32 %v1255, -0.015625
      %v1320 = vmul.f32 %v1256, -0.015625
      %v1321 = vmul.f32 %v1257, -0.015625
      %v1322 = vmul.f32 %v1258, -0.015625
      %v1323 = vmul.f32 %v1259, -0.015625
      %v1324 = vmul.f32 %v1260, -0.015625
      %v1325 = vmul.f32 %v1261, -0.015625
      %v1326 = vmul.f32 %v1262, -0.015625
      %v1327 = vmul.f32 %v1263, -0.015625
      %v1328 = vmul.f32 %v1264, -0.015625
      %v1329 = vmul.f32 %v1265, -0.015625
      %v1330 = vmul.f32 %v1266, -0.015625
      %v1331 = vmul.f32 %v1267, -0.015625
      %v1332 = vmul.f32 %v1268, -0.015625
      %v1333 = vmul.f32 %v1269, -0.015625
      %v1334 = vmul.f32 %v1270, -0.015625
      %v1335 = vmul.f32 %v1271, -0.015625
      %v1336 = vmul.f32 %v1272, -0.015625
      %v1337 = vmul.f32 %v1273, -0.015625
      %v1338 = vmul.f32 %v1274, -0.015625
      %v1339 = vmul.f32 %v1275, -0.015625
      %v1340 = vmul.f32 %v1276, -0.015625
      %v1341 = vmul.f32 %v1277, -0.015625
      %v1342 = vmul.f32 %v1278, -0.015625
      %v1343 = vmul.f32 %v1279, -0.015625
      %v1344 = vmul.f32 %v1280, -0.015625
      %v1345 = vmul.f32 %v1281, -0.015625
      %v1346 = vmul.f32 %v1282, -0.015625
      %v1347 = vmul.f32 %v1283, -0.015625
      %v1348 = vmul.f32 %v1284, -0.015625
      %v1349 = vmul.f32 %v1285, -0.015625
      %v1350 = vmul.f32 %v1286, -0.015625
      %v1351 = vmul.f32 %v1287, -0.015625
      %v1352 = vmul.f32 %v1288, -0.015625
      %v1353 = vmul.f32 %v1289, -0.015625
      %v1354 = vmul.f32 %v1290, -0.015625
      %v1355 = vmul.f32 %v1291, -0.015625
      %v1356 = vmul.f32 %v1292, -0.015625
      %v1357 = vmul.f32 %v1293, -0.015625
      %v1358 = vmul.f32 %v1294, -0.015625
      %v1359 = vmul.f32 %v1295, -0.015625
      %v1360 = vmul.f32 %v1296, -0.015625
      %v1361 = vmul.f32 %v1297, -0.015625
      %v1362 = vmul.f32 %v1298, -0.015625
      %v1363 = vmul.f32 %v1299, -0.015625
      %v1364 = vmul.f32 %v1300, -0.015625
      %v1365 = vmul.f32 %v1301, -0.015625
      %v1366 = vmul.f32 %v1302, -0.015625
      %v1367 = vmul.f32 %v1303, -0.015625
      %v1368 = vmul.f32 %v1304, -0.015625
      %v1369 = vmul.f32 %v1305, -0.015625
      %v1370 = vmul.f32 %v1306, -0.015625
      %v1371 = vmul.f32 %v1307, -0.015625
      %v1372 = vmul.f32 %v1308, -0.015625
      %v1373 = vmul.f32 %v1309, 1.442695
      %v1374 = vpow.pop %v1373
      %v1375 = vmul.f32 %v1310, 1.442695
      %v1376 = vpow.pop %v1375
      %v1377 = vmul.f32 %v1311, 1.442695
      %v1378 = vpow.pop %v1377
      %v1379 = vmul.f32 %v1312, 1.442695
      %v1380 = vpow.pop %v1379
      %v1381 = vmul.f32 %v1313, 1.442695
      %v1382 = vpow.pop %v1381
      %v1383 = vmul.f32 %v1314, 1.442695
      %v1384 = vpow.pop %v1383
      %v1385 = vmul.f32 %v1315, 1.442695
      %v1386 = vpow.pop %v1385
      %v1387 = vmul.f32 %v1316, 1.442695
      %v1388 = vpow.pop %v1387
      %v1389 = vmul.f32 %v1317, 1.442695
      %v1390 = vpow.pop %v1389
      %v1391 = vmul.f32 %v1318, 1.442695
      %v1392 = vpow.pop %v1391
      %v1393 = vmul.f32 %v1319, 1.442695
      %v1394 = vpow.pop %v1393
      %v1395 = vmul.f32 %v1320, 1.442695
      %v1396 = vpow.pop %v1395
      %v1397 = vmul.f32 %v1321, 1.442695
      %v1398 = vpow.pop %v1397
      %v1399 = vmul.f32 %v1322, 1.442695
      %v1400 = vpow.pop %v1399
      %v1401 = vmul.f32 %v1323, 1.442695
      %v1402 = vpow.pop %v1401
      %v1403 = vmul.f32 %v1324, 1.442695
      %v1404 = vpow.pop %v1403
      %v1405 = vmul.f32 %v1325, 1.442695
      %v1406 = vpow.pop %v1405
      %v1407 = vmul.f32 %v1326, 1.442695
      %v1408 = vpow.pop %v1407
      %v1409 = vmul.f32 %v1327, 1.442695
      %v1410 = vpow.pop %v1409
      %v1411 = vmul.f32 %v1328, 1.442695
      %v1412 = vpow.pop %v1411
      %v1413 = vmul.f32 %v1329, 1.442695
      %v1414 = vpow.pop %v1413
      %v1415 = vmul.f32 %v1330, 1.442695
      %v1416 = vpow.pop %v1415
      %v1417 = vmul.f32 %v1331, 1.442695
      %v1418 = vpow.pop %v1417
      %v1419 = vmul.f32 %v1332, 1.442695
      %v1420 = vpow.pop %v1419
      %v1421 = vmul.f32 %v1333, 1.442695
      %v1422 = vpow.pop %v1421
      %v1423 = vmul.f32 %v1334, 1.442695
      %v1424 = vpow.pop %v1423
      %v1425 = vmul.f32 %v1335, 1.442695
      %v1426 = vpow.pop %v1425
      %v1427 = vmul.f32 %v1336, 1.442695
      %v1428 = vpow.pop %v1427
      %v1429 = vmul.f32 %v1337, 1.442695
      %v1430 = vpow.pop %v1429
      %v1431 = vmul.f32 %v1338, 1.442695
      %v1432 = vpow.pop %v1431
      %v1433 = vmul.f32 %v1339, 1.442695
      %v1434 = vpow.pop %v1433
      %v1435 = vmul.f32 %v1340, 1.442695
      %v1436 = vpow.pop %v1435
      %v1437 = vmul.f32 %v1341, 1.442695
      %v1438 = vpow.pop %v1437
      %v1439 = vmul.f32 %v1342, 1.442695
      %v1440 = vpow.pop %v1439
      %v1441 = vmul.f32 %v1343, 1.442695
      %v1442 = vpow.pop %v1441
      %v1443 = vmul.f32 %v1344, 1.442695
      %v1444 = vpow.pop %v1443
      %v1445 = vmul.f32 %v1345, 1.442695
      %v1446 = vpow.pop %v1445
      %v1447 = vmul.f32 %v1346, 1.442695
      %v1448 = vpow.pop %v1447
      %v1449 = vmul.f32 %v1347, 1.442695
      %v1450 = vpow.pop %v1449
      %v1451 = vmul.f32 %v1348, 1.442695
      %v1452 = vpow.pop %v1451
      %v1453 = vmul.f32 %v1349, 1.442695
      %v1454 = vpow.pop %v1453
      %v1455 = vmul.f32 %v1350, 1.442695
      %v1456 = vpow.pop %v1455
      %v1457 = vmul.f32 %v1351, 1.442695
      %v1458 = vpow.pop %v1457
      %v1459 = vmul.f32 %v1352, 1.442695
      %v1460 = vpow.pop %v1459
      %v1461 = vmul.f32 %v1353, 1.442695
      %v1462 = vpow.pop %v1461
      %v1463 = vmul.f32 %v1354, 1.442695
      %v1464 = vpow.pop %v1463
      %v1465 = vmul.f32 %v1355, 1.442695
      %v1466 = vpow.pop %v1465
      %v1467 = vmul.f32 %v1356, 1.442695
      %v1468 = vpow.pop %v1467
      %v1469 = vmul.f32 %v1357, 1.442695
      %v1470 = vpow.pop %v1469
      %v1471 = vmul.f32 %v1358, 1.442695
      %v1472 = vpow.pop %v1471
      %v1473 = vmul.f32 %v1359, 1.442695
      %v1474 = vpow.pop %v1473
      %v1475 = vmul.f32 %v1360, 1.442695
      %v1476 = vpow.pop %v1475
      %v1477 = vmul.f32 %v1361, 1.442695
      %v1478 = vpow.pop %v1477
      %v1479 = vmul.f32 %v1362, 1.442695
      %v1480 = vpow.pop %v1479
      %v1481 = vmul.f32 %v1363, 1.442695
      %v1482 = vpow.pop %v1481
      %v1483 = vmul.f32 %v1364, 1.442695
      %v1484 = vpow.pop %v1483
      %v1485 = vmul.f32 %v1365, 1.442695
      %v1486 = vpow.pop %v1485
      %v1487 = vmul.f32 %v1366, 1.442695
      %v1488 = vpow.pop %v1487
      %v1489 = vmul.f32 %v1367, 1.442695
      %v1490 = vpow.pop %v1489
      %v1491 = vmul.f32 %v1368, 1.442695
      %v1492 = vpow.pop %v1491
      %v1493 = vmul.f32 %v1369, 1.442695
      %v1494 = vpow.pop %v1493
      %v1495 = vmul.f32 %v1370, 1.442695
      %v1496 = vpow.pop %v1495
      %v1497 = vmul.f32 %v1371, 1.442695
      %v1498 = vpow.pop %v1497
      %v1499 = vmul.f32 %v1372, 1.442695
      %v1500 = vpow.pop %v1499
      %v1501 = vsub.f32 1.0, %v1374
      %v1502 = vsub.f32 1.0, %v1376
      %v1503 = vsub.f32 1.0, %v1378
      %v1504 = vsub.f32 1.0, %v1380
      %v1505 = vsub.f32 1.0, %v1382
      %v1506 = vsub.f32 1.0, %v1384
      %v1507 = vsub.f32 1.0, %v1386
      %v1508 = vsub.f32 1.0, %v1388
      %v1509 = vsub.f32 1.0, %v1390
      %v1510 = vsub.f32 1.0, %v1392
      %v1511 = vsub.f32 1.0, %v1394
      %v1512 = vsub.f32 1.0, %v1396
      %v1513 = vsub.f32 1.0, %v1398
      %v1514 = vsub.f32 1.0, %v1400
      %v1515 = vsub.f32 1.0, %v1402
      %v1516 = vsub.f32 1.0, %v1404
      %v1517 = vsub.f32 1.0, %v1406
      %v1518 = vsub.f32 1.0, %v1408
      %v1519 = vsub.f32 1.0, %v1410
      %v1520 = vsub.f32 1.0, %v1412
      %v1521 = vsub.f32 1.0, %v1414
      %v1522 = vsub.f32 1.0, %v1416
      %v1523 = vsub.f32 1.0, %v1418
      %v1524 = vsub.f32 1.0, %v1420
      %v1525 = vsub.f32 1.0, %v1422
      %v1526 = vsub.f32 1.0, %v1424
      %v1527 = vsub.f32 1.0, %v1426
      %v1528 = vsub.f32 1.0, %v1428
      %v1529 = vsub.f32 1.0, %v1430
      %v1530 = vsub.f32 1.0, %v1432
      %v1531 = vsub.f32 1.0, %v1434
      %v1532 = vsub.f32 1.0, %v1436
      %v1533 = vsub.f32 1.0, %v1438
      %v1534 = vsub.f32 1.0, %v1440
      %v1535 = vsub.f32 1.0, %v1442
      %v1536 = vsub.f32 1.0, %v1444
      %v1537 = vsub.f32 1.0, %v1446
      %v1538 = vsub.f32 1.0, %v1448
      %v1539 = vsub.f32 1.0, %v1450
      %v1540 = vsub.f32 1.0, %v1452
      %v1541 = vsub.f32 1.0, %v1454
      %v1542 = vsub.f32 1.0, %v1456
      %v1543 = vsub.f32 1.0, %v1458
      %v1544 = vsub.f32 1.0, %v1460
      %v1545 = vsub.f32 1.0, %v1462
      %v1546 = vsub.f32 1.0, %v1464
      %v1547 = vsub.f32 1.0, %v1466
      %v1548 = vsub.f32 1.0, %v1468
      %v1549 = vsub.f32 1.0, %v1470
      %v1550 = vsub.f32 1.0, %v1472
      %v1551 = vsub.f32 1.0, %v1474
      %v1552 = vsub.f32 1.0, %v1476
      %v1553 = vsub.f32 1.0, %v1478
      %v1554 = vsub.f32 1.0, %v1480
      %v1555 = vsub.f32 1.0, %v1482
      %v1556 = vsub.f32 1.0, %v1484
      %v1557 = vsub.f32 1.0, %v1486
      %v1558 = vsub.f32 1.0, %v1488
      %v1559 = vsub.f32 1.0, %v1490
      %v1560 = vsub.f32 1.0, %v1492
      %v1561 = vsub.f32 1.0, %v1494
      %v1562 = vsub.f32 1.0, %v1496
      %v1563 = vsub.f32 1.0, %v1498
      %v1564 = vsub.f32 1.0, %v1500
      %v1565 = vld [vmem:[#allocation7] sm:$0xff]
      %v1566 = vadd.f32 %v1501, %v1502
      %v1567 = vadd.f32 %v1566, %v1503
      %v1568 = vadd.f32 %v1567, %v1504
      %v1569 = vadd.f32 %v1568, %v1505
      %v1570 = vadd.f32 %v1569, %v1506
      %v1571 = vadd.f32 %v1570, %v1507
      %v1572 = vadd.f32 %v1571, %v1508
      %v1573 = vadd.f32 %v1572, %v1509
      %v1574 = vadd.f32 %v1573, %v1510
      %v1575 = vadd.f32 %v1574, %v1511
      %v1576 = vadd.f32 %v1575, %v1512
      %v1577 = vadd.f32 %v1576, %v1513
      %v1578 = vadd.f32 %v1577, %v1514
      %v1579 = vadd.f32 %v1578, %v1515
      %v1580 = vadd.f32 %v1579, %v1516
      %v1581 = vadd.f32 %v1580, %v1517
      %v1582 = vadd.f32 %v1581, %v1518
      %v1583 = vadd.f32 %v1582, %v1519
      %v1584 = vadd.f32 %v1583, %v1520
      %v1585 = vadd.f32 %v1584, %v1521
      %v1586 = vadd.f32 %v1585, %v1522
      %v1587 = vadd.f32 %v1586, %v1523
      %v1588 = vadd.f32 %v1587, %v1524
      %v1589 = vadd.f32 %v1588, %v1525
      %v1590 = vadd.f32 %v1589, %v1526
      %v1591 = vadd.f32 %v1590, %v1527
      %v1592 = vadd.f32 %v1591, %v1528
      %v1593 = vadd.f32 %v1592, %v1529
      %v1594 = vadd.f32 %v1593, %v1530
      %v1595 = vadd.f32 %v1594, %v1531
      %v1596 = vadd.f32 %v1595, %v1532
      %v1597 = vadd.f32 %v1596, %v1533
      %v1598 = vadd.f32 %v1597, %v1534
      %v1599 = vadd.f32 %v1598, %v1535
      %v1600 = vadd.f32 %v1599, %v1536
      %v1601 = vadd.f32 %v1600, %v1537
      %v1602 = vadd.f32 %v1601, %v1538
      %v1603 = vadd.f32 %v1602, %v1539
      %v1604 = vadd.f32 %v1603, %v1540
      %v1605 = vadd.f32 %v1604, %v1541
      %v1606 = vadd.f32 %v1605, %v1542
      %v1607 = vadd.f32 %v1606, %v1543
      %v1608 = vadd.f32 %v1607, %v1544
      %v1609 = vadd.f32 %v1608, %v1545
      %v1610 = vadd.f32 %v1609, %v1546
      %v1611 = vadd.f32 %v1610, %v1547
      %v1612 = vadd.f32 %v1611, %v1548
      %v1613 = vadd.f32 %v1612, %v1549
      %v1614 = vadd.f32 %v1613, %v1550
      %v1615 = vadd.f32 %v1614, %v1551
      %v1616 = vadd.f32 %v1615, %v1552
      %v1617 = vadd.f32 %v1616, %v1553
      %v1618 = vadd.f32 %v1617, %v1554
      %v1619 = vadd.f32 %v1618, %v1555
      %v1620 = vadd.f32 %v1619, %v1556
      %v1621 = vadd.f32 %v1620, %v1557
      %v1622 = vadd.f32 %v1621, %v1558
      %v1623 = vadd.f32 %v1622, %v1559
      %v1624 = vadd.f32 %v1623, %v1560
      %v1625 = vadd.f32 %v1624, %v1561
      %v1626 = vadd.f32 %v1625, %v1562
      %v1627 = vadd.f32 %v1626, %v1563
      %v1628 = vadd.f32 %v1627, %v1564
      %v1629 = vadd.f32 %v1565, %v1628
      %1630 = vst [vmem:[#allocation7] sm:$0xff] %v1629
    $region29: #{tpu_custom_call.1} parent=1 // pred_fallthru
      _
    // Predicated region
    $region30: #{tpu_custom_call.1} parent=1 // pred_check
      _
    $region31: #{tpu_custom_call.1} parent=1 // pred_check_branch
      %1632 = sbr.rel (0) target = $region33
    $region32: #{tpu_custom_call.1} parent=1 // pred_region
      %s1634 = ssub.s32 128, 128
      %1635 = vsyncadd [#allocation4], %s1634
      %s1637 = sshll.u32 [#allocation7], 4
      %s1638 = int_to_ptr.vmem [resolvable:$true] %s1637
      %1640 = dma.vmem_to_hbm [thread:$0]  %s1638, 128, %s2, [#allocation4]
    $region33: #{tpu_custom_call.1} parent=1 // pred_fallthru
      _
    // Predicated region
    $region34: #{tpu_custom_call.1} parent=1 // pred_check
      _
    $region35: #{tpu_custom_call.1} parent=1 // pred_check_branch
      %1642 = sbr.rel (0) target = $region37
    $region36: #{tpu_custom_call.1} parent=1 // pred_region
      %1643 = dma.done [#allocation4], 128
    $region37: #{tpu_custom_call.1} parent=1 // pred_fallthru
      _
    %1644 = vsyncpa [#allocation3], 1
    %1645 = vsyncpa [#allocation6], 1
    %1646 = vsyncpa [#allocation4], 1

</llo_original>
